<compile_context>
chip_gen: v5e
topology: v5e:2x2
jax: 0.10.0
libtpu: 0.0.40
codegen_flags: <defaults>
</compile_context>

<pallas_src>
import jax
import jax.numpy as jnp
from jax.experimental import pallas as pl
from jax.experimental.pallas import tpu as pltpu

EPS = 1e-5
LEAKY_SLOPE = 0.01  # PyTorch nn.LeakyReLU() default negative_slope


def _bn_lrelu(z, gamma, beta):
    """Training-mode BatchNorm2d (H=W=1) fused into scale/shift, then LeakyReLU."""
    mean = jnp.mean(z, axis=0, keepdims=True)
    var = jnp.mean((z - mean) * (z - mean), axis=0, keepdims=True)
    s = gamma * jax.lax.rsqrt(var + EPS)      # EUP rsqrt -> free bundle slot
    t = beta - mean * s
    zbn = z * s + t
    return jnp.where(zbn > 0, zbn, LEAKY_SLOPE * zbn)


def _disc_kernel(x_ref, w1_ref, w2_ref, w3_ref, g_ref, be_ref, w4_ref, b4_ref,
                 o_ref):
    """Whole forward pass in one step; all refs are full VMEM-resident blocks."""
    # Conv2d(nin, nh, 1) on (B, nin, 1, 1) == channel matmul (conv bias cancels
    # under training-mode BN).  bf16 weight storage, f32 math on the MXU.
    h = _bn_lrelu(
        jnp.dot(x_ref[...], w1_ref[...].astype(jnp.float32),
                preferred_element_type=jnp.float32),
        g_ref[0:1, :], be_ref[0:1, :])
    h = _bn_lrelu(
        jnp.dot(h, w2_ref[...].astype(jnp.float32),
                preferred_element_type=jnp.float32),
        g_ref[1:2, :], be_ref[1:2, :])
    h = _bn_lrelu(
        jnp.dot(h, w3_ref[...].astype(jnp.float32),
                preferred_element_type=jnp.float32),
        g_ref[2:3, :], be_ref[2:3, :])
    # nnSqueeze -> Linear(nh, nout) -> Sigmoid.
    logit = jnp.dot(h, w4_ref[...], preferred_element_type=jnp.float32) + b4_ref[...]
    o_ref[...] = 1.0 / (1.0 + jnp.exp(-logit))


def disc_conv_forward(x_nchw, params):
    """x_nchw: (B, nin, 1, 1) float32.  Returns (B, nout) float32."""
    B, nin, H, W = x_nchw.shape
    assert H == 1 and W == 1, "DiscConv here operates on 1x1 spatial features"
    x = x_nchw.reshape(B, nin).astype(jnp.float32)

    (w1, g1, be1, w2, g2, be2, w3, g3, be3, w4, b4) = params
    nh = w1.shape[1]
    nout = w4.shape[1]

    g = jnp.stack([g1, g2, g3])        # (3, nh) f32
    be = jnp.stack([be1, be2, be3])    # (3, nh) f32
    b4_2d = b4.reshape(1, nout)

    args = (x, w1, w2, w3, g, be, w4, b4_2d)

    def resident(a):
        # Full block, fetched once before the single grid step, VMEM-resident.
        return pl.BlockSpec(a.shape, lambda i, _nd=a.ndim: (0,) * _nd)

    out = pl.pallas_call(
        _disc_kernel,
        out_shape=jax.ShapeDtypeStruct((B, nout), jnp.float32),
        grid_spec=pltpu.PrefetchScalarGridSpec(
            num_scalar_prefetch=0,
            grid=(1,),
            in_specs=[resident(a) for a in args],
            out_specs=pl.BlockSpec((B, nout), lambda i: (0, 0)),
        ),
        compiler_params=pltpu.CompilerParams(
            dimension_semantics=("arbitrary",),
        ),
    )(*args)
    return out


def init_params(key, nin, nh=512, nout=1):
    """Deterministic synthetic parameters (shapes match the PyTorch module).

    Conv weights are stored (in, out) in bfloat16 (halves weight HBM traffic);
    conv biases are omitted because they cancel under training-mode BatchNorm.
    BatchNorm affine params are at PyTorch defaults (gamma=1, beta=0).
    """
    ks = jax.random.split(key, 5)
    scale = 0.05
    w1 = (scale * jax.random.normal(ks[0], (nin, nh), jnp.float32)).astype(jnp.bfloat16)
    w2 = (scale * jax.random.normal(ks[1], (nh, nh), jnp.float32)).astype(jnp.bfloat16)
    w3 = (scale * jax.random.normal(ks[2], (nh, nh), jnp.float32)).astype(jnp.bfloat16)
    w4 = scale * jax.random.normal(ks[3], (nh, nout), jnp.float32)   # Linear(nh, nout)
    b4 = scale * jax.random.normal(ks[4], (nout,), jnp.float32)
    ones = jnp.ones((nh,), jnp.float32)
    zeros = jnp.zeros((nh,), jnp.float32)
    return (w1, ones, zeros, w2, ones, zeros, w3, ones, zeros, w4, b4)


def reference_forward(x_nchw, params):
    """Pure-JAX reference of the same forward pass (for correctness check)."""
    (w1, g1, be1, w2, g2, be2, w3, g3, be3, w4, b4) = params
    x = x_nchw.reshape(x_nchw.shape[0], x_nchw.shape[1]).astype(jnp.float32)

    def block(h, w, g, be):
        z = h @ w.astype(jnp.float32)
        mean = jnp.mean(z, axis=0, keepdims=True)
        var = jnp.mean((z - mean) ** 2, axis=0, keepdims=True)
        zbn = (z - mean) / jnp.sqrt(var + EPS) * g + be
        return jnp.where(zbn > 0, zbn, LEAKY_SLOPE * zbn)

    h = block(x, w1, g1, be1)
    h = block(h, w2, g2, be2)
    h = block(h, w3, g3, be3)
    logit = h @ w4 + b4
    return jax.nn.sigmoid(logit)


if __name__ == "__main__":
    key = jax.random.PRNGKey(0)
    B, nin, nh, nout = 2, 16, 512, 1      # nh is fixed at 512 inside DiscConv
    k_x, k_p = jax.random.split(key)
    x = jax.random.normal(k_x, (B, nin, 1, 1), jnp.float32)
    params = init_params(k_p, nin, nh, nout)

    out = jax.block_until_ready(disc_conv_forward(x, params))
    ref = reference_forward(x, params)

    assert out.shape == (B, nout)
    assert jnp.allclose(out, ref, atol=1e-4, rtol=1e-4), (out, ref)
    print("KERNEL_OK")
</pallas_src>

<mosaic_0001>
module attributes {stable_mosaic.version = 11 : i64} {
  func.func @_disc_kernel(%arg0: i32, %arg1: memref<2x16xf32, #tpu.memory_space<vmem>>, %arg2: memref<16x512xbf16, #tpu.memory_space<vmem>>, %arg3: memref<512x512xbf16, #tpu.memory_space<vmem>>, %arg4: memref<512x512xbf16, #tpu.memory_space<vmem>>, %arg5: memref<3x512xf32, #tpu.memory_space<vmem>>, %arg6: memref<3x512xf32, #tpu.memory_space<vmem>>, %arg7: memref<512x1xf32, #tpu.memory_space<vmem>>, %arg8: memref<1x1xf32, #tpu.memory_space<vmem>>, %arg9: memref<2x1xf32, #tpu.memory_space<vmem>>) attributes {dimension_semantics = [#tpu.dimension_semantics<arbitrary>], iteration_bounds = array<i64: 1>, scalar_prefetch = 0 : i64, scratch_operands = 0 : i64, tpu.core_type = #tpu.core_type<tc>, window_params = [{pipeline_mode = #tpu.pipeline_mode<synchronous>, transform_indices = @transform_0, window_bounds = array<i64: 2, 16>}, {pipeline_mode = #tpu.pipeline_mode<synchronous>, transform_indices = @transform_1, window_bounds = array<i64: 16, 512>}, {pipeline_mode = #tpu.pipeline_mode<synchronous>, transform_indices = @transform_2, window_bounds = array<i64: 512, 512>}, {pipeline_mode = #tpu.pipeline_mode<synchronous>, transform_indices = @transform_3, window_bounds = array<i64: 512, 512>}, {pipeline_mode = #tpu.pipeline_mode<synchronous>, transform_indices = @transform_4, window_bounds = array<i64: 3, 512>}, {pipeline_mode = #tpu.pipeline_mode<synchronous>, transform_indices = @transform_5, window_bounds = array<i64: 3, 512>}, {pipeline_mode = #tpu.pipeline_mode<synchronous>, transform_indices = @transform_6, window_bounds = array<i64: 512, 1>}, {pipeline_mode = #tpu.pipeline_mode<synchronous>, transform_indices = @transform_7, window_bounds = array<i64: 1, 1>}, {pipeline_mode = #tpu.pipeline_mode<synchronous>, transform_indices = @transform_8, window_bounds = array<i64: 2, 1>}]} {
    %c0 = arith.constant 0 : index
    %c0_0 = arith.constant 0 : index
    %0 = vector.load %arg1[%c0, %c0_0] : memref<2x16xf32, #tpu.memory_space<vmem>>, vector<2x16xf32>
    %c0_1 = arith.constant 0 : index
    %c0_2 = arith.constant 0 : index
    %1 = vector.load %arg2[%c0_1, %c0_2] : memref<16x512xbf16, #tpu.memory_space<vmem>>, vector<16x512xbf16>
    %2 = arith.extf %1 : vector<16x512xbf16> to vector<16x512xf32>
    %cst = arith.constant dense<0.000000e+00> : vector<2x512xf32>
    %3 = tpu.matmul %0, %2, %cst {dimension_numbers = #tpu.dot_dimension_numbers<[1], [0], [0], [1], [0, 0, 1, 1], [], []>} : vector<2x16xf32>, vector<16x512xf32>, vector<2x512xf32> -> vector<2x512xf32>
    %c0_3 = arith.constant 0 : index
    %c0_4 = arith.constant 0 : index
    %4 = vector.load %arg5[%c0_3, %c0_4] : memref<3x512xf32, #tpu.memory_space<vmem>>, vector<1x512xf32>
    %c0_5 = arith.constant 0 : index
    %c0_6 = arith.constant 0 : index
    %5 = vector.load %arg6[%c0_5, %c0_6] : memref<3x512xf32, #tpu.memory_space<vmem>>, vector<1x512xf32>
    %cst_7 = arith.constant dense<0.000000e+00> : vector<512xf32>
    %6 = vector.multi_reduction <add>, %3, %cst_7 [0] : vector<2x512xf32> to vector<512xf32>
    %7 = vector.shape_cast %6 : vector<512xf32> to vector<1x512xf32>
    %cst_8 = arith.constant 2.000000e+00 : f32
    %8 = vector.broadcast %cst_8 : f32 to vector<1x512xf32>
    %9 = arith.divf %7, %8 : vector<1x512xf32>
    %10 = vector.broadcast %9 : vector<1x512xf32> to vector<2x512xf32>
    %11 = arith.subf %3, %10 : vector<2x512xf32>
    %12 = vector.broadcast %9 : vector<1x512xf32> to vector<2x512xf32>
    %13 = arith.subf %3, %12 : vector<2x512xf32>
    %14 = arith.mulf %11, %13 : vector<2x512xf32>
    %cst_9 = arith.constant dense<0.000000e+00> : vector<512xf32>
    %15 = vector.multi_reduction <add>, %14, %cst_9 [0] : vector<2x512xf32> to vector<512xf32>
    %16 = vector.shape_cast %15 : vector<512xf32> to vector<1x512xf32>
    %cst_10 = arith.constant 2.000000e+00 : f32
    %17 = vector.broadcast %cst_10 : f32 to vector<1x512xf32>
    %18 = arith.divf %16, %17 : vector<1x512xf32>
    %cst_11 = arith.constant 9.99999974E-6 : f32
    %19 = vector.broadcast %cst_11 : f32 to vector<1x512xf32>
    %20 = arith.addf %18, %19 : vector<1x512xf32>
    %21 = math.rsqrt %20 : vector<1x512xf32>
    %22 = arith.mulf %4, %21 : vector<1x512xf32>
    %23 = arith.mulf %9, %22 : vector<1x512xf32>
    %24 = arith.subf %5, %23 : vector<1x512xf32>
    %25 = vector.broadcast %22 : vector<1x512xf32> to vector<2x512xf32>
    %26 = arith.mulf %3, %25 : vector<2x512xf32>
    %27 = vector.broadcast %24 : vector<1x512xf32> to vector<2x512xf32>
    %28 = arith.addf %26, %27 : vector<2x512xf32>
    %cst_12 = arith.constant 0.000000e+00 : f32
    %29 = vector.broadcast %cst_12 : f32 to vector<2x512xf32>
    %30 = arith.cmpf ogt, %28, %29 : vector<2x512xf32>
    %cst_13 = arith.constant 0.00999999977 : f32
    %31 = vector.broadcast %cst_13 : f32 to vector<2x512xf32>
    %32 = arith.mulf %31, %28 : vector<2x512xf32>
    %33 = arith.select %30, %28, %32 : vector<2x512xi1>, vector<2x512xf32>
    %c0_14 = arith.constant 0 : index
    %c0_15 = arith.constant 0 : index
    %34 = vector.load %arg3[%c0_14, %c0_15] : memref<512x512xbf16, #tpu.memory_space<vmem>>, vector<512x512xbf16>
    %35 = arith.extf %34 : vector<512x512xbf16> to vector<512x512xf32>
    %cst_16 = arith.constant dense<0.000000e+00> : vector<2x512xf32>
    %36 = tpu.matmul %33, %35, %cst_16 {dimension_numbers = #tpu.dot_dimension_numbers<[1], [0], [0], [1], [0, 0, 1, 1], [], []>} : vector<2x512xf32>, vector<512x512xf32>, vector<2x512xf32> -> vector<2x512xf32>
    %c1 = arith.constant 1 : index
    %c0_17 = arith.constant 0 : index
    %37 = vector.load %arg5[%c1, %c0_17] : memref<3x512xf32, #tpu.memory_space<vmem>>, vector<1x512xf32>
    %c1_18 = arith.constant 1 : index
    %c0_19 = arith.constant 0 : index
    %38 = vector.load %arg6[%c1_18, %c0_19] : memref<3x512xf32, #tpu.memory_space<vmem>>, vector<1x512xf32>
    %cst_20 = arith.constant dense<0.000000e+00> : vector<512xf32>
    %39 = vector.multi_reduction <add>, %36, %cst_20 [0] : vector<2x512xf32> to vector<512xf32>
    %40 = vector.shape_cast %39 : vector<512xf32> to vector<1x512xf32>
    %cst_21 = arith.constant 2.000000e+00 : f32
    %41 = vector.broadcast %cst_21 : f32 to vector<1x512xf32>
    %42 = arith.divf %40, %41 : vector<1x512xf32>
    %43 = vector.broadcast %42 : vector<1x512xf32> to vector<2x512xf32>
    %44 = arith.subf %36, %43 : vector<2x512xf32>
    %45 = vector.broadcast %42 : vector<1x512xf32> to vector<2x512xf32>
    %46 = arith.subf %36, %45 : vector<2x512xf32>
    %47 = arith.mulf %44, %46 : vector<2x512xf32>
    %cst_22 = arith.constant dense<0.000000e+00> : vector<512xf32>
    %48 = vector.multi_reduction <add>, %47, %cst_22 [0] : vector<2x512xf32> to vector<512xf32>
    %49 = vector.shape_cast %48 : vector<512xf32> to vector<1x512xf32>
    %cst_23 = arith.constant 2.000000e+00 : f32
    %50 = vector.broadcast %cst_23 : f32 to vector<1x512xf32>
    %51 = arith.divf %49, %50 : vector<1x512xf32>
    %cst_24 = arith.constant 9.99999974E-6 : f32
    %52 = vector.broadcast %cst_24 : f32 to vector<1x512xf32>
    %53 = arith.addf %51, %52 : vector<1x512xf32>
    %54 = math.rsqrt %53 : vector<1x512xf32>
    %55 = arith.mulf %37, %54 : vector<1x512xf32>
    %56 = arith.mulf %42, %55 : vector<1x512xf32>
    %57 = arith.subf %38, %56 : vector<1x512xf32>
    %58 = vector.broadcast %55 : vector<1x512xf32> to vector<2x512xf32>
    %59 = arith.mulf %36, %58 : vector<2x512xf32>
    %60 = vector.broadcast %57 : vector<1x512xf32> to vector<2x512xf32>
    %61 = arith.addf %59, %60 : vector<2x512xf32>
    %cst_25 = arith.constant 0.000000e+00 : f32
    %62 = vector.broadcast %cst_25 : f32 to vector<2x512xf32>
    %63 = arith.cmpf ogt, %61, %62 : vector<2x512xf32>
    %cst_26 = arith.constant 0.00999999977 : f32
    %64 = vector.broadcast %cst_26 : f32 to vector<2x512xf32>
    %65 = arith.mulf %64, %61 : vector<2x512xf32>
    %66 = arith.select %63, %61, %65 : vector<2x512xi1>, vector<2x512xf32>
    %c0_27 = arith.constant 0 : index
    %c0_28 = arith.constant 0 : index
    %67 = vector.load %arg4[%c0_27, %c0_28] : memref<512x512xbf16, #tpu.memory_space<vmem>>, vector<512x512xbf16>
    %68 = arith.extf %67 : vector<512x512xbf16> to vector<512x512xf32>
    %cst_29 = arith.constant dense<0.000000e+00> : vector<2x512xf32>
    %69 = tpu.matmul %66, %68, %cst_29 {dimension_numbers = #tpu.dot_dimension_numbers<[1], [0], [0], [1], [0, 0, 1, 1], [], []>} : vector<2x512xf32>, vector<512x512xf32>, vector<2x512xf32> -> vector<2x512xf32>
    %c2 = arith.constant 2 : index
    %c0_30 = arith.constant 0 : index
    %70 = vector.load %arg5[%c2, %c0_30] : memref<3x512xf32, #tpu.memory_space<vmem>>, vector<1x512xf32>
    %c2_31 = arith.constant 2 : index
    %c0_32 = arith.constant 0 : index
    %71 = vector.load %arg6[%c2_31, %c0_32] : memref<3x512xf32, #tpu.memory_space<vmem>>, vector<1x512xf32>
    %cst_33 = arith.constant dense<0.000000e+00> : vector<512xf32>
    %72 = vector.multi_reduction <add>, %69, %cst_33 [0] : vector<2x512xf32> to vector<512xf32>
    %73 = vector.shape_cast %72 : vector<512xf32> to vector<1x512xf32>
    %cst_34 = arith.constant 2.000000e+00 : f32
    %74 = vector.broadcast %cst_34 : f32 to vector<1x512xf32>
    %75 = arith.divf %73, %74 : vector<1x512xf32>
    %76 = vector.broadcast %75 : vector<1x512xf32> to vector<2x512xf32>
    %77 = arith.subf %69, %76 : vector<2x512xf32>
    %78 = vector.broadcast %75 : vector<1x512xf32> to vector<2x512xf32>
    %79 = arith.subf %69, %78 : vector<2x512xf32>
    %80 = arith.mulf %77, %79 : vector<2x512xf32>
    %cst_35 = arith.constant dense<0.000000e+00> : vector<512xf32>
    %81 = vector.multi_reduction <add>, %80, %cst_35 [0] : vector<2x512xf32> to vector<512xf32>
    %82 = vector.shape_cast %81 : vector<512xf32> to vector<1x512xf32>
    %cst_36 = arith.constant 2.000000e+00 : f32
    %83 = vector.broadcast %cst_36 : f32 to vector<1x512xf32>
    %84 = arith.divf %82, %83 : vector<1x512xf32>
    %cst_37 = arith.constant 9.99999974E-6 : f32
    %85 = vector.broadcast %cst_37 : f32 to vector<1x512xf32>
    %86 = arith.addf %84, %85 : vector<1x512xf32>
    %87 = math.rsqrt %86 : vector<1x512xf32>
    %88 = arith.mulf %70, %87 : vector<1x512xf32>
    %89 = arith.mulf %75, %88 : vector<1x512xf32>
    %90 = arith.subf %71, %89 : vector<1x512xf32>
    %91 = vector.broadcast %88 : vector<1x512xf32> to vector<2x512xf32>
    %92 = arith.mulf %69, %91 : vector<2x512xf32>
    %93 = vector.broadcast %90 : vector<1x512xf32> to vector<2x512xf32>
    %94 = arith.addf %92, %93 : vector<2x512xf32>
    %cst_38 = arith.constant 0.000000e+00 : f32
    %95 = vector.broadcast %cst_38 : f32 to vector<2x512xf32>
    %96 = arith.cmpf ogt, %94, %95 : vector<2x512xf32>
    %cst_39 = arith.constant 0.00999999977 : f32
    %97 = vector.broadcast %cst_39 : f32 to vector<2x512xf32>
    %98 = arith.mulf %97, %94 : vector<2x512xf32>
    %99 = arith.select %96, %94, %98 : vector<2x512xi1>, vector<2x512xf32>
    %c0_40 = arith.constant 0 : index
    %c0_41 = arith.constant 0 : index
    %100 = vector.load %arg7[%c0_40, %c0_41] : memref<512x1xf32, #tpu.memory_space<vmem>>, vector<512x1xf32>
    %cst_42 = arith.constant dense<0.000000e+00> : vector<2x1xf32>
    %101 = tpu.matmul %99, %100, %cst_42 {dimension_numbers = #tpu.dot_dimension_numbers<[1], [0], [0], [1], [0, 0, 1, 1], [], []>} : vector<2x512xf32>, vector<512x1xf32>, vector<2x1xf32> -> vector<2x1xf32>
    %c0_43 = arith.constant 0 : index
    %c0_44 = arith.constant 0 : index
    %102 = vector.load %arg8[%c0_43, %c0_44] : memref<1x1xf32, #tpu.memory_space<vmem>>, vector<1x1xf32>
    %103 = vector.broadcast %102 : vector<1x1xf32> to vector<2x1xf32>
    %104 = arith.addf %101, %103 : vector<2x1xf32>
    %cst_45 = arith.constant 0.000000e+00 : f32
    %105 = vector.broadcast %cst_45 : f32 to vector<2x1xf32>
    %106 = arith.subf %105, %104 : vector<2x1xf32>
    %107 = math.exp %106 : vector<2x1xf32>
    %cst_46 = arith.constant 1.000000e+00 : f32
    %108 = vector.broadcast %cst_46 : f32 to vector<2x1xf32>
    %109 = arith.addf %108, %107 : vector<2x1xf32>
    %cst_47 = arith.constant 1.000000e+00 : f32
    %110 = vector.broadcast %cst_47 : f32 to vector<2x1xf32>
    %111 = arith.divf %110, %109 : vector<2x1xf32>
    %c0_48 = arith.constant 0 : index
    %c0_49 = arith.constant 0 : index
    %112 = vector.load %arg9[%c0_48, %c0_49] : memref<2x1xf32, #tpu.memory_space<vmem>>, vector<2x1xf32>
    tpu.vector_store %arg9[%c0_48, %c0_49], %111 {strides = array<i32>} : memref<2x1xf32, #tpu.memory_space<vmem>>, vector<2x1xf32>,
    return
  }
  func.func @transform_0(%arg0: i32) -> (i32, i32) {
    %c0_i32 = arith.constant 0 : i32
    %c0_i32_0 = arith.constant 0 : i32
    %c0_i32_1 = arith.constant 0 : i32
    return %c0_i32, %c0_i32_0 : i32, i32
  }
  func.func @transform_1(%arg0: i32) -> (i32, i32) {
    %c0_i32 = arith.constant 0 : i32
    %c0_i32_0 = arith.constant 0 : i32
    %c0_i32_1 = arith.constant 0 : i32
    return %c0_i32, %c0_i32_0 : i32, i32
  }
  func.func @transform_2(%arg0: i32) -> (i32, i32) {
    %c0_i32 = arith.constant 0 : i32
    %c0_i32_0 = arith.constant 0 : i32
    %c0_i32_1 = arith.constant 0 : i32
    return %c0_i32, %c0_i32_0 : i32, i32
  }
  func.func @transform_3(%arg0: i32) -> (i32, i32) {
    %c0_i32 = arith.constant 0 : i32
    %c0_i32_0 = arith.constant 0 : i32
    %c0_i32_1 = arith.constant 0 : i32
    return %c0_i32, %c0_i32_0 : i32, i32
  }
  func.func @transform_4(%arg0: i32) -> (i32, i32) {
    %c0_i32 = arith.constant 0 : i32
    %c0_i32_0 = arith.constant 0 : i32
    %c0_i32_1 = arith.constant 0 : i32
    return %c0_i32, %c0_i32_0 : i32, i32
  }
  func.func @transform_5(%arg0: i32) -> (i32, i32) {
    %c0_i32 = arith.constant 0 : i32
    %c0_i32_0 = arith.constant 0 : i32
    %c0_i32_1 = arith.constant 0 : i32
    return %c0_i32, %c0_i32_0 : i32, i32
  }
  func.func @transform_6(%arg0: i32) -> (i32, i32) {
    %c0_i32 = arith.constant 0 : i32
    %c0_i32_0 = arith.constant 0 : i32
    %c0_i32_1 = arith.constant 0 : i32
    return %c0_i32, %c0_i32_0 : i32, i32
  }
  func.func @transform_7(%arg0: i32) -> (i32, i32) {
    %c0_i32 = arith.constant 0 : i32
    %c0_i32_0 = arith.constant 0 : i32
    %c0_i32_1 = arith.constant 0 : i32
    return %c0_i32, %c0_i32_0 : i32, i32
  }
  func.func @transform_8(%arg0: i32) -> (i32, i32) {
    %c0_i32 = arith.constant 0 : i32
    %c0_i32_0 = arith.constant 0 : i32
    %c0_i32_1 = arith.constant 0 : i32
    return %c0_i32, %c0_i32_0 : i32, i32
  }
}

</mosaic_0001>

<llo_original>
// kernel: tpu_custom_call.1
$region0: #{tpu_custom_call.1}
  #allocation0 [shape = 'u32[]', space=smem, size = 0x4, offset = 0x4, fixed_abs, tag = 'smem constant byte address 0x4 - core index']
  #allocation1 [shape = 'u32[72,128]{1,0:T(1,128)}', space=vmem, size = 0x9000, scoped, tag = 'internal scratch']
  #allocation2 [shape = 'f32[1,1]{1,0:T(1,128)S(1)}', space=vmem, size = 0x200, scoped, tag = 'scoped memory for tpu_custom_call.1']
  %s0 = inlined_call_operand.vmem [shape: f32[2,16], index: 0, kind: input, shape index: {}]
  %s1 = inlined_call_operand.vmem [shape: bf16[16,512], index: 1, kind: input, shape index: {}]
  %s2 = inlined_call_operand.hbm [shape: bf16[512,512], index: 2, kind: input, shape index: {}]
  %s3 = inlined_call_operand.hbm [shape: bf16[512,512], index: 3, kind: input, shape index: {}]
  %s4 = inlined_call_operand.vmem [shape: f32[3,512], index: 4, kind: input, shape index: {}]
  %s5 = inlined_call_operand.vmem [shape: f32[3,512], index: 5, kind: input, shape index: {}]
  %s6 = inlined_call_operand.vmem [shape: f32[512,1], index: 6, kind: input, shape index: {}]
  %s7 = inlined_call_operand.<no memory space> [shape: f32[1,1], index: 7, kind: input, shape index: {}]
  %s8 = inlined_call_operand.vmem [shape: f32[2,1], index: 8, kind: output, shape index: {}]
  %s9 = sld [smem:[#allocation0]]
  $region50: #{tpu_custom_call.1} parent=0
    _
  %s11 = ssub.s32 1, %s9
  %s12 = scalar_select 0, %s11, %s9
  %v13 = vstv %s7
  %14 = vst [vmem:[#allocation2] sm:$0x1] %v13
  $region1: #{tpu_custom_call.1} parent=0
    #allocation3 [shape = 'u8[524288]{0}', space=vmem, size = 0x80000, scoped, tag = 'input window, operand 2, single buffered']
    #allocation4 [shape = 's32[1]{0}', space=sflag, size = 0x4, scoped, tag = 'scoped memory for tpu_custom_call.1']
    #allocation5 [shape = 'u8[524288]{0}', space=vmem, size = 0x80000, scoped, tag = 'input window, operand 3, single buffered']
    #allocation6 [shape = 's32[1]{0}', space=sflag, size = 0x4, scoped, tag = 'scoped memory for tpu_custom_call.1']
    %15 = vsyncpa [#allocation4], 0
    %16 = vsyncpa [#allocation6], 0
    // Predicated region
    $region2: #{tpu_custom_call.1} parent=1 // pred_check
      _
    $region3: #{tpu_custom_call.1} parent=1 // pred_check_branch
      %18 = sbr.rel (0) target = $region5
    $region4: #{tpu_custom_call.1} parent=1 // pred_region
      _
    $region5: #{tpu_custom_call.1} parent=1 // pred_fallthru
      _
    // Predicated region
    $region6: #{tpu_custom_call.1} parent=1 // pred_check
      _
    $region7: #{tpu_custom_call.1} parent=1 // pred_check_branch
      %20 = sbr.rel (0) target = $region9
    $region8: #{tpu_custom_call.1} parent=1 // pred_region
      _
    $region9: #{tpu_custom_call.1} parent=1 // pred_fallthru
      _
    // Predicated region
    $region10: #{tpu_custom_call.1} parent=1 // pred_check
      _
    $region11: #{tpu_custom_call.1} parent=1 // pred_check_branch
      %22 = sbr.rel (0) target = $region13
    $region12: #{tpu_custom_call.1} parent=1 // pred_region
      %24 = vsyncadd [#allocation4], 0
      %s25 = sshll.u32 %s2, 4
      %s26 = int_to_ptr.hbm [resolvable:$true] %s25
      %s27 = sshll.u32 [#allocation3], 4
      %s28 = int_to_ptr.vmem [resolvable:$true] %s27
      %33 = dma.hbm_to_vmem [thread:$0]  %s26, 16384, %s28, [#allocation4], 256, 256, 16
    $region13: #{tpu_custom_call.1} parent=1 // pred_fallthru
      _
    // Predicated region
    $region14: #{tpu_custom_call.1} parent=1 // pred_check
      _
    $region15: #{tpu_custom_call.1} parent=1 // pred_check_branch
      %35 = sbr.rel (0) target = $region17
    $region16: #{tpu_custom_call.1} parent=1 // pred_region
      %37 = vsyncadd [#allocation6], 0
      %s38 = sshll.u32 %s3, 4
      %s39 = int_to_ptr.hbm [resolvable:$true] %s38
      %s40 = sshll.u32 [#allocation5], 4
      %s41 = int_to_ptr.vmem [resolvable:$true] %s40
      %46 = dma.hbm_to_vmem [thread:$0]  %s39, 16384, %s41, [#allocation6], 256, 256, 16
    $region17: #{tpu_custom_call.1} parent=1 // pred_fallthru
      _
    // Predicated region
    $region18: #{tpu_custom_call.1} parent=1 // pred_check
      _
    $region19: #{tpu_custom_call.1} parent=1 // pred_check_branch
      %48 = sbr.rel (0) target = $region21
    $region20: #{tpu_custom_call.1} parent=1 // pred_region
      _
    $region21: #{tpu_custom_call.1} parent=1 // pred_fallthru
      _
    // Predicated region
    $region22: #{tpu_custom_call.1} parent=1 // pred_check
      _
    $region23: #{tpu_custom_call.1} parent=1 // pred_check_branch
      %50 = sbr.rel (0) target = $region25
    $region24: #{tpu_custom_call.1} parent=1 // pred_region
      _
    $region25: #{tpu_custom_call.1} parent=1 // pred_fallthru
      _
    // Predicated region
    $region26: #{tpu_custom_call.1} parent=1 // pred_check
      _
    $region27: #{tpu_custom_call.1} parent=1 // pred_check_branch
      %52 = sbr.rel (0) target = $region29
    $region28: #{tpu_custom_call.1} parent=1 // pred_region
      _
    $region29: #{tpu_custom_call.1} parent=1 // pred_fallthru
      _
    // Predicated region
    $region30: #{tpu_custom_call.1} parent=1 // pred_check
      _
    $region31: #{tpu_custom_call.1} parent=1 // pred_check_branch
      %54 = sbr.rel (0) target = $region33
    $region32: #{tpu_custom_call.1} parent=1 // pred_region
      _
    $region33: #{tpu_custom_call.1} parent=1 // pred_fallthru
      _
    // Predicated region
    $region34: #{tpu_custom_call.1} parent=1 // pred_check
      _
    $region35: #{tpu_custom_call.1} parent=1 // pred_check_branch
      %56 = sbr.rel (0) target = $region37
    $region36: #{tpu_custom_call.1} parent=1 // pred_region
      %58 = dma.done [#allocation4], 16384
    $region37: #{tpu_custom_call.1} parent=1 // pred_fallthru
      _
    // Predicated region
    $region38: #{tpu_custom_call.1} parent=1 // pred_check
      _
    $region39: #{tpu_custom_call.1} parent=1 // pred_check_branch
      %60 = sbr.rel (0) target = $region41
    $region40: #{tpu_custom_call.1} parent=1 // pred_region
      %62 = dma.done [#allocation6], 16384
    $region41: #{tpu_custom_call.1} parent=1 // pred_fallthru
      _
    %v63 = vld [vmem:[%s0] sm:$0x3]
    %v64 = vld [vmem:[%s1] sm:$0xff]
    %v65 = vld [vmem:[%s1 + $0x8] sm:$0xff]
    %v66 = vld [vmem:[%s1 + $0x10] sm:$0xff]
    %v67 = vld [vmem:[%s1 + $0x18] sm:$0xff]
    %v68 = vunpack.c.l.bf16 %v64
    %v69 = vunpack.c.h.bf16 %v64
    %v70 = vunpack.c.l.bf16 %v65
    %v71 = vunpack.c.h.bf16 %v65
    %v72 = vunpack.c.l.bf16 %v66
    %v73 = vunpack.c.h.bf16 %v66
    %v74 = vunpack.c.l.bf16 %v67
    %v75 = vunpack.c.h.bf16 %v67
    %vm76 = vcmask 130048
    %v78 = vsel %vm76, %v63, 0
    %80 = vmatpush.msra.mxu0 0.0
    %81 = vmatpush.msra.mxu0 0.0
    %82 = vmatpush.msra.mxu0 0.0
    %83 = vmatpush.msra.mxu0 0.0
    %84 = vmatpush.msra.mxu0 0.0
    %85 = vmatpush.msra.mxu0 0.0
    %86 = vmatpush.msra.mxu0 0.0
    %87 = vmatpush.msra.mxu0 0.0
    %88 = vmatpush.msra.mxu0 0.0
    %89 = vmatpush.msra.mxu0 0.0
    %90 = vmatpush.msra.mxu0 0.0
    %91 = vmatpush.msra.mxu0 0.0
    %92 = vmatpush.msra.mxu0 0.0
    %93 = vmatpush.msra.mxu0 0.0
    %94 = vmatpush.msra.mxu0 %v72
    %95 = vmatpush.msra.mxu0 %v68
    %96 = vmatmul.f32.gmra.mxu0 %v78
    %v97 = vpop.f32.mrf.mxu0
    %v98 = vadd.f32 0.0, %v97
    %99 = vdwg.mxu0
    %100 = vmatpush.msra.mxu0 0.0
    %101 = vmatpush.msra.mxu0 0.0
    %102 = vmatpush.msra.mxu0 0.0
    %103 = vmatpush.msra.mxu0 0.0
    %104 = vmatpush.msra.mxu0 0.0
    %105 = vmatpush.msra.mxu0 0.0
    %106 = vmatpush.msra.mxu0 0.0
    %107 = vmatpush.msra.mxu0 0.0
    %108 = vmatpush.msra.mxu0 0.0
    %109 = vmatpush.msra.mxu0 0.0
    %110 = vmatpush.msra.mxu0 0.0
    %111 = vmatpush.msra.mxu0 0.0
    %112 = vmatpush.msra.mxu0 0.0
    %113 = vmatpush.msra.mxu0 0.0
    %114 = vmatpush.msra.mxu0 %v73
    %115 = vmatpush.msra.mxu0 %v69
    %116 = vmatmul.f32.gmra.mxu0 %v78
    %v117 = vpop.f32.mrf.mxu0
    %v118 = vadd.f32 0.0, %v117
    %119 = vdwg.mxu0
    %120 = vmatpush.msra.mxu0 0.0
    %121 = vmatpush.msra.mxu0 0.0
    %122 = vmatpush.msra.mxu0 0.0
    %123 = vmatpush.msra.mxu0 0.0
    %124 = vmatpush.msra.mxu0 0.0
    %125 = vmatpush.msra.mxu0 0.0
    %126 = vmatpush.msra.mxu0 0.0
    %127 = vmatpush.msra.mxu0 0.0
    %128 = vmatpush.msra.mxu0 0.0
    %129 = vmatpush.msra.mxu0 0.0
    %130 = vmatpush.msra.mxu0 0.0
    %131 = vmatpush.msra.mxu0 0.0
    %132 = vmatpush.msra.mxu0 0.0
    %133 = vmatpush.msra.mxu0 0.0
    %134 = vmatpush.msra.mxu0 %v74
    %135 = vmatpush.msra.mxu0 %v70
    %136 = vmatmul.f32.gmra.mxu0 %v78
    %v137 = vpop.f32.mrf.mxu0
    %v138 = vadd.f32 0.0, %v137
    %139 = vdwg.mxu0
    %140 = vmatpush.msra.mxu0 0.0
    %141 = vmatpush.msra.mxu0 0.0
    %142 = vmatpush.msra.mxu0 0.0
    %143 = vmatpush.msra.mxu0 0.0
    %144 = vmatpush.msra.mxu0 0.0
    %145 = vmatpush.msra.mxu0 0.0
    %146 = vmatpush.msra.mxu0 0.0
    %147 = vmatpush.msra.mxu0 0.0
    %148 = vmatpush.msra.mxu0 0.0
    %149 = vmatpush.msra.mxu0 0.0
    %150 = vmatpush.msra.mxu0 0.0
    %151 = vmatpush.msra.mxu0 0.0
    %152 = vmatpush.msra.mxu0 0.0
    %153 = vmatpush.msra.mxu0 0.0
    %154 = vmatpush.msra.mxu0 %v75
    %155 = vmatpush.msra.mxu0 %v71
    %156 = vmatmul.f32.gmra.mxu0 %v78
    %v157 = vpop.f32.mrf.mxu0
    %v158 = vadd.f32 0.0, %v157
    %159 = vdwg.mxu0
    %v160 = vld [vmem:[%s4] ss:$4 sm:$0xf]
    %v161 = vld [vmem:[%s5] ss:$4 sm:$0xf]
    %vm162 = vcmask 1041408
    %v163 = vsel %vm162, %v98, 0.0
    %v164 = vrot.slane %v163, 4
    %v165 = vadd.f32 %v163, %v164
    %v166 = vrot.slane %v165, 2
    %v167 = vadd.f32 %v165, %v166
    %v168 = vrot.slane %v167, 1
    %v169 = vadd.f32 %v167, %v168
    %v170 = vsel %vm162, %v118, 0.0
    %v171 = vrot.slane %v170, 4
    %v172 = vadd.f32 %v170, %v171
    %v173 = vrot.slane %v172, 2
    %v174 = vadd.f32 %v172, %v173
    %v175 = vrot.slane %v174, 1
    %v176 = vadd.f32 %v174, %v175
    %v177 = vsel %vm162, %v138, 0.0
    %v178 = vrot.slane %v177, 4
    %v179 = vadd.f32 %v177, %v178
    %v180 = vrot.slane %v179, 2
    %v181 = vadd.f32 %v179, %v180
    %v182 = vrot.slane %v181, 1
    %v183 = vadd.f32 %v181, %v182
    %v184 = vsel %vm162, %v158, 0.0
    %v185 = vrot.slane %v184, 4
    %v186 = vadd.f32 %v184, %v185
    %v187 = vrot.slane %v186, 2
    %v188 = vadd.f32 %v186, %v187
    %v189 = vrot.slane %v188, 1
    %v190 = vadd.f32 %v188, %v189
    %v191 = vrcp.pop 2.0
    %v192 = vmul.f32 2.0, %v191
    %v193 = vsub.f32 1.0, %v192
    %v194 = vmul.f32 %v191, %v193
    %v195 = vadd.f32 %v191, %v194
    %vm196 = vweird.f32 %v191
    %v197 = vsel %vm196, %v191, %v195
    %v198 = vmul.f32 %v169, %v197
    %v199 = vmul.f32 %v176, %v197
    %v200 = vmul.f32 %v183, %v197
    %v201 = vmul.f32 %v190, %v197
    %v202 = vsub.f32 %v98, %v198
    %v203 = vsub.f32 %v118, %v199
    %v204 = vsub.f32 %v138, %v200
    %v205 = vsub.f32 %v158, %v201
    %v206 = vmul.f32 %v202, %v202
    %v207 = vmul.f32 %v203, %v203
    %v208 = vmul.f32 %v204, %v204
    %v209 = vmul.f32 %v205, %v205
    %v210 = vsel %vm162, %v206, 0.0
    %v211 = vrot.slane %v210, 4
    %v212 = vadd.f32 %v210, %v211
    %v213 = vrot.slane %v212, 2
    %v214 = vadd.f32 %v212, %v213
    %v215 = vrot.slane %v214, 1
    %v216 = vadd.f32 %v214, %v215
    %v217 = vsel %vm162, %v207, 0.0
    %v218 = vrot.slane %v217, 4
    %v219 = vadd.f32 %v217, %v218
    %v220 = vrot.slane %v219, 2
    %v221 = vadd.f32 %v219, %v220
    %v222 = vrot.slane %v221, 1
    %v223 = vadd.f32 %v221, %v222
    %v224 = vsel %vm162, %v208, 0.0
    %v225 = vrot.slane %v224, 4
    %v226 = vadd.f32 %v224, %v225
    %v227 = vrot.slane %v226, 2
    %v228 = vadd.f32 %v226, %v227
    %v229 = vrot.slane %v228, 1
    %v230 = vadd.f32 %v228, %v229
    %v231 = vsel %vm162, %v209, 0.0
    %v232 = vrot.slane %v231, 4
    %v233 = vadd.f32 %v231, %v232
    %v234 = vrot.slane %v233, 2
    %v235 = vadd.f32 %v233, %v234
    %v236 = vrot.slane %v235, 1
    %v237 = vadd.f32 %v235, %v236
    %v238 = vmul.f32 %v216, %v197
    %v239 = vmul.f32 %v223, %v197
    %v240 = vmul.f32 %v230, %v197
    %v241 = vmul.f32 %v237, %v197
    %v242 = vadd.f32 %v238, 1e-05
    %v243 = vadd.f32 %v239, 1e-05
    %v244 = vadd.f32 %v240, 1e-05
    %v245 = vadd.f32 %v241, 1e-05
    %v246 = vrsqrt.pop %v242
    %v247 = vmul.f32 %v246, %v242
    %v248 = vmul.f32 %v247, %v246
    %v249 = vmul.f32 0.5, %v248
    %v250 = vsub.f32 1.5, %v249
    %v251 = vmul.f32 %v246, %v250
    %vm252 = vweird.f32 %v242
    %vm253 = vweird.f32 %v246
    %vm254 = vmor %vm252, %vm253
    %v255 = vsel %vm254, %v246, %v251
    %v256 = vrsqrt.pop %v243
    %v257 = vmul.f32 %v256, %v243
    %v258 = vmul.f32 %v257, %v256
    %v259 = vmul.f32 0.5, %v258
    %v260 = vsub.f32 1.5, %v259
    %v261 = vmul.f32 %v256, %v260
    %vm262 = vweird.f32 %v243
    %vm263 = vweird.f32 %v256
    %vm264 = vmor %vm262, %vm263
    %v265 = vsel %vm264, %v256, %v261
    %v266 = vrsqrt.pop %v244
    %v267 = vmul.f32 %v266, %v244
    %v268 = vmul.f32 %v267, %v266
    %v269 = vmul.f32 0.5, %v268
    %v270 = vsub.f32 1.5, %v269
    %v271 = vmul.f32 %v266, %v270
    %vm272 = vweird.f32 %v244
    %vm273 = vweird.f32 %v266
    %vm274 = vmor %vm272, %vm273
    %v275 = vsel %vm274, %v266, %v271
    %v276 = vrsqrt.pop %v245
    %v277 = vmul.f32 %v276, %v245
    %v278 = vmul.f32 %v277, %v276
    %v279 = vmul.f32 0.5, %v278
    %v280 = vsub.f32 1.5, %v279
    %v281 = vmul.f32 %v276, %v280
    %vm282 = vweird.f32 %v245
    %vm283 = vweird.f32 %v276
    %vm284 = vmor %vm282, %vm283
    %v285 = vsel %vm284, %v276, %v281
    %v290 = vrot.slane %v265, 7
    %v291 = vrot.slane %v275, 6
    %v292 = vrot.slane %v285, 5
    %vm293 = vcmask 1040384
    %v294 = vsel %vm293, %v255, %v290
    %vm295 = vcmask 1042434
    %v296 = vsel %vm295, %v291, %v292
    %v297 = vsel %vm162, %v294, %v296
    %v299 = vmul.f32 %v160, %v297
    %v301 = vperm.slane %v299, 0
    %v302 = vperm.slane %v299, 1
    %v303 = vperm.slane %v299, 2
    %v304 = vperm.slane %v299, 3
    %v309 = vmul.f32 %v198, %v301
    %v310 = vmul.f32 %v199, %v302
    %v311 = vmul.f32 %v200, %v303
    %v312 = vmul.f32 %v201, %v304
    %v317 = vrot.slane %v310, 7
    %v318 = vrot.slane %v311, 6
    %v319 = vrot.slane %v312, 5
    %v320 = vsel %vm293, %v309, %v317
    %v321 = vsel %vm295, %v318, %v319
    %v322 = vsel %vm162, %v320, %v321
    %v324 = vsub.f32 %v161, %v322
    %v325 = vmul.f32 %v98, %v301
    %v326 = vmul.f32 %v118, %v302
    %v327 = vmul.f32 %v138, %v303
    %v328 = vmul.f32 %v158, %v304
    %v330 = vperm.slane %v324, 0
    %v331 = vperm.slane %v324, 1
    %v332 = vperm.slane %v324, 2
    %v333 = vperm.slane %v324, 3
    %v338 = vadd.f32 %v325, %v330
    %v339 = vadd.f32 %v326, %v331
    %v340 = vadd.f32 %v327, %v332
    %v341 = vadd.f32 %v328, %v333
    %vm342 = vcmp.gt.f32.partialorder %v338, 0.0
    %vm343 = vcmp.gt.f32.partialorder %v339, 0.0
    %vm344 = vcmp.gt.f32.partialorder %v340, 0.0
    %vm345 = vcmp.gt.f32.partialorder %v341, 0.0
    %v346 = vmul.f32 %v338, 0.01
    %v347 = vmul.f32 %v339, 0.01
    %v348 = vmul.f32 %v340, 0.01
    %v349 = vmul.f32 %v341, 0.01
    %v350 = vsel %vm342, %v338, %v346
    %v351 = vsel %vm343, %v339, %v347
    %v352 = vsel %vm344, %v340, %v348
    %v353 = vsel %vm345, %v341, %v349
    %v354 = vld [vmem:[#allocation3] sm:$0xff]
    %v355 = vld [vmem:[#allocation3 + $0x8] sm:$0xff]
    %v356 = vld [vmem:[#allocation3 + $0x10] sm:$0xff]
    %v357 = vld [vmem:[#allocation3 + $0x18] sm:$0xff]
    %v358 = vld [vmem:[#allocation3 + $0x20] sm:$0xff]
    %v359 = vld [vmem:[#allocation3 + $0x28] sm:$0xff]
    %v360 = vld [vmem:[#allocation3 + $0x30] sm:$0xff]
    %v361 = vld [vmem:[#allocation3 + $0x38] sm:$0xff]
    %v362 = vld [vmem:[#allocation3 + $0x40] sm:$0xff]
    %v363 = vld [vmem:[#allocation3 + $0x48] sm:$0xff]
    %v364 = vld [vmem:[#allocation3 + $0x50] sm:$0xff]
    %v365 = vld [vmem:[#allocation3 + $0x58] sm:$0xff]
    %v366 = vld [vmem:[#allocation3 + $0x60] sm:$0xff]
    %v367 = vld [vmem:[#allocation3 + $0x68] sm:$0xff]
    %v368 = vld [vmem:[#allocation3 + $0x70] sm:$0xff]
    %v369 = vld [vmem:[#allocation3 + $0x78] sm:$0xff]
    %v370 = vld [vmem:[#allocation3 + $0x80] sm:$0xff]
    %v371 = vld [vmem:[#allocation3 + $0x88] sm:$0xff]
    %v372 = vld [vmem:[#allocation3 + $0x90] sm:$0xff]
    %v373 = vld [vmem:[#allocation3 + $0x98] sm:$0xff]
    %v374 = vld [vmem:[#allocation3 + $0xa0] sm:$0xff]
    %v375 = vld [vmem:[#allocation3 + $0xa8] sm:$0xff]
    %v376 = vld [vmem:[#allocation3 + $0xb0] sm:$0xff]
    %v377 = vld [vmem:[#allocation3 + $0xb8] sm:$0xff]
    %v378 = vld [vmem:[#allocation3 + $0xc0] sm:$0xff]
    %v379 = vld [vmem:[#allocation3 + $0xc8] sm:$0xff]
    %v380 = vld [vmem:[#allocation3 + $0xd0] sm:$0xff]
    %v381 = vld [vmem:[#allocation3 + $0xd8] sm:$0xff]
    %v382 = vld [vmem:[#allocation3 + $0xe0] sm:$0xff]
    %v383 = vld [vmem:[#allocation3 + $0xe8] sm:$0xff]
    %v384 = vld [vmem:[#allocation3 + $0xf0] sm:$0xff]
    %v385 = vld [vmem:[#allocation3 + $0xf8] sm:$0xff]
    %v386 = vld [vmem:[#allocation3 + $0x100] sm:$0xff]
    %v387 = vld [vmem:[#allocation3 + $0x108] sm:$0xff]
    %v388 = vld [vmem:[#allocation3 + $0x110] sm:$0xff]
    %v389 = vld [vmem:[#allocation3 + $0x118] sm:$0xff]
    %v390 = vld [vmem:[#allocation3 + $0x120] sm:$0xff]
    %v391 = vld [vmem:[#allocation3 + $0x128] sm:$0xff]
    %v392 = vld [vmem:[#allocation3 + $0x130] sm:$0xff]
    %v393 = vld [vmem:[#allocation3 + $0x138] sm:$0xff]
    %v394 = vld [vmem:[#allocation3 + $0x140] sm:$0xff]
    %v395 = vld [vmem:[#allocation3 + $0x148] sm:$0xff]
    %v396 = vld [vmem:[#allocation3 + $0x150] sm:$0xff]
    %v397 = vld [vmem:[#allocation3 + $0x158] sm:$0xff]
    %v398 = vld [vmem:[#allocation3 + $0x160] sm:$0xff]
    %v399 = vld [vmem:[#allocation3 + $0x168] sm:$0xff]
    %v400 = vld [vmem:[#allocation3 + $0x170] sm:$0xff]
    %v401 = vld [vmem:[#allocation3 + $0x178] sm:$0xff]
    %v402 = vld [vmem:[#allocation3 + $0x180] sm:$0xff]
    %v403 = vld [vmem:[#allocation3 + $0x188] sm:$0xff]
    %v404 = vld [vmem:[#allocation3 + $0x190] sm:$0xff]
    %v405 = vld [vmem:[#allocation3 + $0x198] sm:$0xff]
    %v406 = vld [vmem:[#allocation3 + $0x1a0] sm:$0xff]
    %v407 = vld [vmem:[#allocation3 + $0x1a8] sm:$0xff]
    %v408 = vld [vmem:[#allocation3 + $0x1b0] sm:$0xff]
    %v409 = vld [vmem:[#allocation3 + $0x1b8] sm:$0xff]
    %v410 = vld [vmem:[#allocation3 + $0x1c0] sm:$0xff]
    %v411 = vld [vmem:[#allocation3 + $0x1c8] sm:$0xff]
    %v412 = vld [vmem:[#allocation3 + $0x1d0] sm:$0xff]
    %v413 = vld [vmem:[#allocation3 + $0x1d8] sm:$0xff]
    %v414 = vld [vmem:[#allocation3 + $0x1e0] sm:$0xff]
    %v415 = vld [vmem:[#allocation3 + $0x1e8] sm:$0xff]
    %v416 = vld [vmem:[#allocation3 + $0x1f0] sm:$0xff]
    %v417 = vld [vmem:[#allocation3 + $0x1f8] sm:$0xff]
    %v418 = vld [vmem:[#allocation3 + $0x200] sm:$0xff]
    %v419 = vld [vmem:[#allocation3 + $0x208] sm:$0xff]
    %v420 = vld [vmem:[#allocation3 + $0x210] sm:$0xff]
    %v421 = vld [vmem:[#allocation3 + $0x218] sm:$0xff]
    %v422 = vld [vmem:[#allocation3 + $0x220] sm:$0xff]
    %v423 = vld [vmem:[#allocation3 + $0x228] sm:$0xff]
    %v424 = vld [vmem:[#allocation3 + $0x230] sm:$0xff]
    %v425 = vld [vmem:[#allocation3 + $0x238] sm:$0xff]
    %v426 = vld [vmem:[#allocation3 + $0x240] sm:$0xff]
    %v427 = vld [vmem:[#allocation3 + $0x248] sm:$0xff]
    %v428 = vld [vmem:[#allocation3 + $0x250] sm:$0xff]
    %v429 = vld [vmem:[#allocation3 + $0x258] sm:$0xff]
    %v430 = vld [vmem:[#allocation3 + $0x260] sm:$0xff]
    %v431 = vld [vmem:[#allocation3 + $0x268] sm:$0xff]
    %v432 = vld [vmem:[#allocation3 + $0x270] sm:$0xff]
    %v433 = vld [vmem:[#allocation3 + $0x278] sm:$0xff]
    %v434 = vld [vmem:[#allocation3 + $0x280] sm:$0xff]
    %v435 = vld [vmem:[#allocation3 + $0x288] sm:$0xff]
    %v436 = vld [vmem:[#allocation3 + $0x290] sm:$0xff]
    %v437 = vld [vmem:[#allocation3 + $0x298] sm:$0xff]
    %v438 = vld [vmem:[#allocation3 + $0x2a0] sm:$0xff]
    %v439 = vld [vmem:[#allocation3 + $0x2a8] sm:$0xff]
    %v440 = vld [vmem:[#allocation3 + $0x2b0] sm:$0xff]
    %v441 = vld [vmem:[#allocation3 + $0x2b8] sm:$0xff]
    %v442 = vld [vmem:[#allocation3 + $0x2c0] sm:$0xff]
    %v443 = vld [vmem:[#allocation3 + $0x2c8] sm:$0xff]
    %v444 = vld [vmem:[#allocation3 + $0x2d0] sm:$0xff]
    %v445 = vld [vmem:[#allocation3 + $0x2d8] sm:$0xff]
    %v446 = vld [vmem:[#allocation3 + $0x2e0] sm:$0xff]
    %v447 = vld [vmem:[#allocation3 + $0x2e8] sm:$0xff]
    %v448 = vld [vmem:[#allocation3 + $0x2f0] sm:$0xff]
    %v449 = vld [vmem:[#allocation3 + $0x2f8] sm:$0xff]
    %v450 = vld [vmem:[#allocation3 + $0x300] sm:$0xff]
    %v451 = vld [vmem:[#allocation3 + $0x308] sm:$0xff]
    %v452 = vld [vmem:[#allocation3 + $0x310] sm:$0xff]
    %v453 = vld [vmem:[#allocation3 + $0x318] sm:$0xff]
    %v454 = vld [vmem:[#allocation3 + $0x320] sm:$0xff]
    %v455 = vld [vmem:[#allocation3 + $0x328] sm:$0xff]
    %v456 = vld [vmem:[#allocation3 + $0x330] sm:$0xff]
    %v457 = vld [vmem:[#allocation3 + $0x338] sm:$0xff]
    %v458 = vld [vmem:[#allocation3 + $0x340] sm:$0xff]
    %v459 = vld [vmem:[#allocation3 + $0x348] sm:$0xff]
    %v460 = vld [vmem:[#allocation3 + $0x350] sm:$0xff]
    %v461 = vld [vmem:[#allocation3 + $0x358] sm:$0xff]
    %v462 = vld [vmem:[#allocation3 + $0x360] sm:$0xff]
    %v463 = vld [vmem:[#allocation3 + $0x368] sm:$0xff]
    %v464 = vld [vmem:[#allocation3 + $0x370] sm:$0xff]
    %v465 = vld [vmem:[#allocation3 + $0x378] sm:$0xff]
    %v466 = vld [vmem:[#allocation3 + $0x380] sm:$0xff]
    %v467 = vld [vmem:[#allocation3 + $0x388] sm:$0xff]
    %v468 = vld [vmem:[#allocation3 + $0x390] sm:$0xff]
    %v469 = vld [vmem:[#allocation3 + $0x398] sm:$0xff]
    %v470 = vld [vmem:[#allocation3 + $0x3a0] sm:$0xff]
    %v471 = vld [vmem:[#allocation3 + $0x3a8] sm:$0xff]
    %v472 = vld [vmem:[#allocation3 + $0x3b0] sm:$0xff]
    %v473 = vld [vmem:[#allocation3 + $0x3b8] sm:$0xff]
    %v474 = vld [vmem:[#allocation3 + $0x3c0] sm:$0xff]
    %v475 = vld [vmem:[#allocation3 + $0x3c8] sm:$0xff]
    %v476 = vld [vmem:[#allocation3 + $0x3d0] sm:$0xff]
    %v477 = vld [vmem:[#allocation3 + $0x3d8] sm:$0xff]
    %v478 = vld [vmem:[#allocation3 + $0x3e0] sm:$0xff]
    %v479 = vld [vmem:[#allocation3 + $0x3e8] sm:$0xff]
    %v480 = vld [vmem:[#allocation3 + $0x3f0] sm:$0xff]
    %v481 = vld [vmem:[#allocation3 + $0x3f8] sm:$0xff]
    %v482 = vunpack.c.l.bf16 %v354
    %v483 = vunpack.c.h.bf16 %v354
    %v484 = vunpack.c.l.bf16 %v355
    %v485 = vunpack.c.h.bf16 %v355
    %v486 = vunpack.c.l.bf16 %v356
    %v487 = vunpack.c.h.bf16 %v356
    %v488 = vunpack.c.l.bf16 %v357
    %v489 = vunpack.c.h.bf16 %v357
    %v490 = vunpack.c.l.bf16 %v358
    %v491 = vunpack.c.h.bf16 %v358
    %v492 = vunpack.c.l.bf16 %v359
    %v493 = vunpack.c.h.bf16 %v359
    %v494 = vunpack.c.l.bf16 %v360
    %v495 = vunpack.c.h.bf16 %v360
    %v496 = vunpack.c.l.bf16 %v361
    %v497 = vunpack.c.h.bf16 %v361
    %v498 = vunpack.c.l.bf16 %v362
    %v499 = vunpack.c.h.bf16 %v362
    %v500 = vunpack.c.l.bf16 %v363
    %v501 = vunpack.c.h.bf16 %v363
    %v502 = vunpack.c.l.bf16 %v364
    %v503 = vunpack.c.h.bf16 %v364
    %v504 = vunpack.c.l.bf16 %v365
    %v505 = vunpack.c.h.bf16 %v365
    %v506 = vunpack.c.l.bf16 %v366
    %v507 = vunpack.c.h.bf16 %v366
    %v508 = vunpack.c.l.bf16 %v367
    %v509 = vunpack.c.h.bf16 %v367
    %v510 = vunpack.c.l.bf16 %v368
    %v511 = vunpack.c.h.bf16 %v368
    %v512 = vunpack.c.l.bf16 %v369
    %v513 = vunpack.c.h.bf16 %v369
    %v514 = vunpack.c.l.bf16 %v370
    %v515 = vunpack.c.h.bf16 %v370
    %v516 = vunpack.c.l.bf16 %v371
    %v517 = vunpack.c.h.bf16 %v371
    %v518 = vunpack.c.l.bf16 %v372
    %v519 = vunpack.c.h.bf16 %v372
    %v520 = vunpack.c.l.bf16 %v373
    %v521 = vunpack.c.h.bf16 %v373
    %v522 = vunpack.c.l.bf16 %v374
    %v523 = vunpack.c.h.bf16 %v374
    %v524 = vunpack.c.l.bf16 %v375
    %v525 = vunpack.c.h.bf16 %v375
    %v526 = vunpack.c.l.bf16 %v376
    %v527 = vunpack.c.h.bf16 %v376
    %v528 = vunpack.c.l.bf16 %v377
    %v529 = vunpack.c.h.bf16 %v377
    %v530 = vunpack.c.l.bf16 %v378
    %v531 = vunpack.c.h.bf16 %v378
    %v532 = vunpack.c.l.bf16 %v379
    %v533 = vunpack.c.h.bf16 %v379
    %v534 = vunpack.c.l.bf16 %v380
    %v535 = vunpack.c.h.bf16 %v380
    %v536 = vunpack.c.l.bf16 %v381
    %v537 = vunpack.c.h.bf16 %v381
    %v538 = vunpack.c.l.bf16 %v382
    %v539 = vunpack.c.h.bf16 %v382
    %v540 = vunpack.c.l.bf16 %v383
    %v541 = vunpack.c.h.bf16 %v383
    %v542 = vunpack.c.l.bf16 %v384
    %v543 = vunpack.c.h.bf16 %v384
    %v544 = vunpack.c.l.bf16 %v385
    %v545 = vunpack.c.h.bf16 %v385
    %v546 = vunpack.c.l.bf16 %v386
    %v547 = vunpack.c.h.bf16 %v386
    %v548 = vunpack.c.l.bf16 %v387
    %v549 = vunpack.c.h.bf16 %v387
    %v550 = vunpack.c.l.bf16 %v388
    %v551 = vunpack.c.h.bf16 %v388
    %v552 = vunpack.c.l.bf16 %v389
    %v553 = vunpack.c.h.bf16 %v389
    %v554 = vunpack.c.l.bf16 %v390
    %v555 = vunpack.c.h.bf16 %v390
    %v556 = vunpack.c.l.bf16 %v391
    %v557 = vunpack.c.h.bf16 %v391
    %v558 = vunpack.c.l.bf16 %v392
    %v559 = vunpack.c.h.bf16 %v392
    %v560 = vunpack.c.l.bf16 %v393
    %v561 = vunpack.c.h.bf16 %v393
    %v562 = vunpack.c.l.bf16 %v394
    %v563 = vunpack.c.h.bf16 %v394
    %v564 = vunpack.c.l.bf16 %v395
    %v565 = vunpack.c.h.bf16 %v395
    %v566 = vunpack.c.l.bf16 %v396
    %v567 = vunpack.c.h.bf16 %v396
    %v568 = vunpack.c.l.bf16 %v397
    %v569 = vunpack.c.h.bf16 %v397
    %v570 = vunpack.c.l.bf16 %v398
    %v571 = vunpack.c.h.bf16 %v398
    %v572 = vunpack.c.l.bf16 %v399
    %v573 = vunpack.c.h.bf16 %v399
    %v574 = vunpack.c.l.bf16 %v400
    %v575 = vunpack.c.h.bf16 %v400
    %v576 = vunpack.c.l.bf16 %v401
    %v577 = vunpack.c.h.bf16 %v401
    %v578 = vunpack.c.l.bf16 %v402
    %v579 = vunpack.c.h.bf16 %v402
    %v580 = vunpack.c.l.bf16 %v403
    %v581 = vunpack.c.h.bf16 %v403
    %v582 = vunpack.c.l.bf16 %v404
    %v583 = vunpack.c.h.bf16 %v404
    %v584 = vunpack.c.l.bf16 %v405
    %v585 = vunpack.c.h.bf16 %v405
    %v586 = vunpack.c.l.bf16 %v406
    %v587 = vunpack.c.h.bf16 %v406
    %v588 = vunpack.c.l.bf16 %v407
    %v589 = vunpack.c.h.bf16 %v407
    %v590 = vunpack.c.l.bf16 %v408
    %v591 = vunpack.c.h.bf16 %v408
    %v592 = vunpack.c.l.bf16 %v409
    %v593 = vunpack.c.h.bf16 %v409
    %v594 = vunpack.c.l.bf16 %v410
    %v595 = vunpack.c.h.bf16 %v410
    %v596 = vunpack.c.l.bf16 %v411
    %v597 = vunpack.c.h.bf16 %v411
    %v598 = vunpack.c.l.bf16 %v412
    %v599 = vunpack.c.h.bf16 %v412
    %v600 = vunpack.c.l.bf16 %v413
    %v601 = vunpack.c.h.bf16 %v413
    %v602 = vunpack.c.l.bf16 %v414
    %v603 = vunpack.c.h.bf16 %v414
    %v604 = vunpack.c.l.bf16 %v415
    %v605 = vunpack.c.h.bf16 %v415
    %v606 = vunpack.c.l.bf16 %v416
    %v607 = vunpack.c.h.bf16 %v416
    %v608 = vunpack.c.l.bf16 %v417
    %v609 = vunpack.c.h.bf16 %v417
    %v610 = vunpack.c.l.bf16 %v418
    %v611 = vunpack.c.h.bf16 %v418
    %v612 = vunpack.c.l.bf16 %v419
    %v613 = vunpack.c.h.bf16 %v419
    %v614 = vunpack.c.l.bf16 %v420
    %v615 = vunpack.c.h.bf16 %v420
    %v616 = vunpack.c.l.bf16 %v421
    %v617 = vunpack.c.h.bf16 %v421
    %v618 = vunpack.c.l.bf16 %v422
    %v619 = vunpack.c.h.bf16 %v422
    %v620 = vunpack.c.l.bf16 %v423
    %v621 = vunpack.c.h.bf16 %v423
    %v622 = vunpack.c.l.bf16 %v424
    %v623 = vunpack.c.h.bf16 %v424
    %v624 = vunpack.c.l.bf16 %v425
    %v625 = vunpack.c.h.bf16 %v425
    %v626 = vunpack.c.l.bf16 %v426
    %v627 = vunpack.c.h.bf16 %v426
    %v628 = vunpack.c.l.bf16 %v427
    %v629 = vunpack.c.h.bf16 %v427
    %v630 = vunpack.c.l.bf16 %v428
    %v631 = vunpack.c.h.bf16 %v428
    %v632 = vunpack.c.l.bf16 %v429
    %v633 = vunpack.c.h.bf16 %v429
    %v634 = vunpack.c.l.bf16 %v430
    %v635 = vunpack.c.h.bf16 %v430
    %v636 = vunpack.c.l.bf16 %v431
    %v637 = vunpack.c.h.bf16 %v431
    %v638 = vunpack.c.l.bf16 %v432
    %v639 = vunpack.c.h.bf16 %v432
    %v640 = vunpack.c.l.bf16 %v433
    %v641 = vunpack.c.h.bf16 %v433
    %v642 = vunpack.c.l.bf16 %v434
    %v643 = vunpack.c.h.bf16 %v434
    %v644 = vunpack.c.l.bf16 %v435
    %v645 = vunpack.c.h.bf16 %v435
    %v646 = vunpack.c.l.bf16 %v436
    %v647 = vunpack.c.h.bf16 %v436
    %v648 = vunpack.c.l.bf16 %v437
    %v649 = vunpack.c.h.bf16 %v437
    %v650 = vunpack.c.l.bf16 %v438
    %v651 = vunpack.c.h.bf16 %v438
    %v652 = vunpack.c.l.bf16 %v439
    %v653 = vunpack.c.h.bf16 %v439
    %v654 = vunpack.c.l.bf16 %v440
    %v655 = vunpack.c.h.bf16 %v440
    %v656 = vunpack.c.l.bf16 %v441
    %v657 = vunpack.c.h.bf16 %v441
    %v658 = vunpack.c.l.bf16 %v442
    %v659 = vunpack.c.h.bf16 %v442
    %v660 = vunpack.c.l.bf16 %v443
    %v661 = vunpack.c.h.bf16 %v443
    %v662 = vunpack.c.l.bf16 %v444
    %v663 = vunpack.c.h.bf16 %v444
    %v664 = vunpack.c.l.bf16 %v445
    %v665 = vunpack.c.h.bf16 %v445
    %v666 = vunpack.c.l.bf16 %v446
    %v667 = vunpack.c.h.bf16 %v446
    %v668 = vunpack.c.l.bf16 %v447
    %v669 = vunpack.c.h.bf16 %v447
    %v670 = vunpack.c.l.bf16 %v448
    %v671 = vunpack.c.h.bf16 %v448
    %v672 = vunpack.c.l.bf16 %v449
    %v673 = vunpack.c.h.bf16 %v449
    %v674 = vunpack.c.l.bf16 %v450
    %v675 = vunpack.c.h.bf16 %v450
    %v676 = vunpack.c.l.bf16 %v451
    %v677 = vunpack.c.h.bf16 %v451
    %v678 = vunpack.c.l.bf16 %v452
    %v679 = vunpack.c.h.bf16 %v452
    %v680 = vunpack.c.l.bf16 %v453
    %v681 = vunpack.c.h.bf16 %v453
    %v682 = vunpack.c.l.bf16 %v454
    %v683 = vunpack.c.h.bf16 %v454
    %v684 = vunpack.c.l.bf16 %v455
    %v685 = vunpack.c.h.bf16 %v455
    %v686 = vunpack.c.l.bf16 %v456
    %v687 = vunpack.c.h.bf16 %v456
    %v688 = vunpack.c.l.bf16 %v457
    %v689 = vunpack.c.h.bf16 %v457
    %v690 = vunpack.c.l.bf16 %v458
    %v691 = vunpack.c.h.bf16 %v458
    %v692 = vunpack.c.l.bf16 %v459
    %v693 = vunpack.c.h.bf16 %v459
    %v694 = vunpack.c.l.bf16 %v460
    %v695 = vunpack.c.h.bf16 %v460
    %v696 = vunpack.c.l.bf16 %v461
    %v697 = vunpack.c.h.bf16 %v461
    %v698 = vunpack.c.l.bf16 %v462
    %v699 = vunpack.c.h.bf16 %v462
    %v700 = vunpack.c.l.bf16 %v463
    %v701 = vunpack.c.h.bf16 %v463
    %v702 = vunpack.c.l.bf16 %v464
    %v703 = vunpack.c.h.bf16 %v464
    %v704 = vunpack.c.l.bf16 %v465
    %v705 = vunpack.c.h.bf16 %v465
    %v706 = vunpack.c.l.bf16 %v466
    %v707 = vunpack.c.h.bf16 %v466
    %v708 = vunpack.c.l.bf16 %v467
    %v709 = vunpack.c.h.bf16 %v467
    %v710 = vunpack.c.l.bf16 %v468
    %v711 = vunpack.c.h.bf16 %v468
    %v712 = vunpack.c.l.bf16 %v469
    %v713 = vunpack.c.h.bf16 %v469
    %v714 = vunpack.c.l.bf16 %v470
    %v715 = vunpack.c.h.bf16 %v470
    %v716 = vunpack.c.l.bf16 %v471
    %v717 = vunpack.c.h.bf16 %v471
    %v718 = vunpack.c.l.bf16 %v472
    %v719 = vunpack.c.h.bf16 %v472
    %v720 = vunpack.c.l.bf16 %v473
    %v721 = vunpack.c.h.bf16 %v473
    %v722 = vunpack.c.l.bf16 %v474
    %v723 = vunpack.c.h.bf16 %v474
    %v724 = vunpack.c.l.bf16 %v475
    %v725 = vunpack.c.h.bf16 %v475
    %v726 = vunpack.c.l.bf16 %v476
    %v727 = vunpack.c.h.bf16 %v476
    %v728 = vunpack.c.l.bf16 %v477
    %v729 = vunpack.c.h.bf16 %v477
    %v730 = vunpack.c.l.bf16 %v478
    %v731 = vunpack.c.h.bf16 %v478
    %v732 = vunpack.c.l.bf16 %v479
    %v733 = vunpack.c.h.bf16 %v479
    %v734 = vunpack.c.l.bf16 %v480
    %v735 = vunpack.c.h.bf16 %v480
    %v736 = vunpack.c.l.bf16 %v481
    %v737 = vunpack.c.h.bf16 %v481
    %738 = vmatpush.msra.mxu0 %v542
    %739 = vmatpush.msra.mxu0 %v538
    %740 = vmatpush.msra.mxu0 %v534
    %741 = vmatpush.msra.mxu0 %v530
    %742 = vmatpush.msra.mxu0 %v526
    %743 = vmatpush.msra.mxu0 %v522
    %744 = vmatpush.msra.mxu0 %v518
    %745 = vmatpush.msra.mxu0 %v514
    %746 = vmatpush.msra.mxu0 %v510
    %747 = vmatpush.msra.mxu0 %v506
    %748 = vmatpush.msra.mxu0 %v502
    %749 = vmatpush.msra.mxu0 %v498
    %750 = vmatpush.msra.mxu0 %v494
    %751 = vmatpush.msra.mxu0 %v490
    %752 = vmatpush.msra.mxu0 %v486
    %753 = vmatpush.msra.mxu0 %v482
    %754 = vmatmul.f32.gmra.mxu0 %v350
    %v755 = vpop.f32.mrf.mxu0
    %v756 = vadd.f32 0.0, %v755
    %757 = vdwg.mxu0
    %758 = vmatpush.msra.mxu0 %v606
    %759 = vmatpush.msra.mxu0 %v602
    %760 = vmatpush.msra.mxu0 %v598
    %761 = vmatpush.msra.mxu0 %v594
    %762 = vmatpush.msra.mxu0 %v590
    %763 = vmatpush.msra.mxu0 %v586
    %764 = vmatpush.msra.mxu0 %v582
    %765 = vmatpush.msra.mxu0 %v578
    %766 = vmatpush.msra.mxu0 %v574
    %767 = vmatpush.msra.mxu0 %v570
    %768 = vmatpush.msra.mxu0 %v566
    %769 = vmatpush.msra.mxu0 %v562
    %770 = vmatpush.msra.mxu0 %v558
    %771 = vmatpush.msra.mxu0 %v554
    %772 = vmatpush.msra.mxu0 %v550
    %773 = vmatpush.msra.mxu0 %v546
    %774 = vmatmul.f32.gmra.mxu0 %v351
    %v775 = vpop.f32.mrf.mxu0
    %v776 = vadd.f32 %v756, %v775
    %777 = vdwg.mxu0
    %778 = vmatpush.msra.mxu0 %v670
    %779 = vmatpush.msra.mxu0 %v666
    %780 = vmatpush.msra.mxu0 %v662
    %781 = vmatpush.msra.mxu0 %v658
    %782 = vmatpush.msra.mxu0 %v654
    %783 = vmatpush.msra.mxu0 %v650
    %784 = vmatpush.msra.mxu0 %v646
    %785 = vmatpush.msra.mxu0 %v642
    %786 = vmatpush.msra.mxu0 %v638
    %787 = vmatpush.msra.mxu0 %v634
    %788 = vmatpush.msra.mxu0 %v630
    %789 = vmatpush.msra.mxu0 %v626
    %790 = vmatpush.msra.mxu0 %v622
    %791 = vmatpush.msra.mxu0 %v618
    %792 = vmatpush.msra.mxu0 %v614
    %793 = vmatpush.msra.mxu0 %v610
    %794 = vmatmul.f32.gmra.mxu0 %v352
    %v795 = vpop.f32.mrf.mxu0
    %v796 = vadd.f32 %v776, %v795
    %797 = vdwg.mxu0
    %798 = vmatpush.msra.mxu0 %v734
    %799 = vmatpush.msra.mxu0 %v730
    %800 = vmatpush.msra.mxu0 %v726
    %801 = vmatpush.msra.mxu0 %v722
    %802 = vmatpush.msra.mxu0 %v718
    %803 = vmatpush.msra.mxu0 %v714
    %804 = vmatpush.msra.mxu0 %v710
    %805 = vmatpush.msra.mxu0 %v706
    %806 = vmatpush.msra.mxu0 %v702
    %807 = vmatpush.msra.mxu0 %v698
    %808 = vmatpush.msra.mxu0 %v694
    %809 = vmatpush.msra.mxu0 %v690
    %810 = vmatpush.msra.mxu0 %v686
    %811 = vmatpush.msra.mxu0 %v682
    %812 = vmatpush.msra.mxu0 %v678
    %813 = vmatpush.msra.mxu0 %v674
    %814 = vmatmul.f32.gmra.mxu0 %v353
    %v815 = vpop.f32.mrf.mxu0
    %v816 = vadd.f32 %v796, %v815
    %817 = vdwg.mxu0
    %818 = vmatpush.msra.mxu0 %v543
    %819 = vmatpush.msra.mxu0 %v539
    %820 = vmatpush.msra.mxu0 %v535
    %821 = vmatpush.msra.mxu0 %v531
    %822 = vmatpush.msra.mxu0 %v527
    %823 = vmatpush.msra.mxu0 %v523
    %824 = vmatpush.msra.mxu0 %v519
    %825 = vmatpush.msra.mxu0 %v515
    %826 = vmatpush.msra.mxu0 %v511
    %827 = vmatpush.msra.mxu0 %v507
    %828 = vmatpush.msra.mxu0 %v503
    %829 = vmatpush.msra.mxu0 %v499
    %830 = vmatpush.msra.mxu0 %v495
    %831 = vmatpush.msra.mxu0 %v491
    %832 = vmatpush.msra.mxu0 %v487
    %833 = vmatpush.msra.mxu0 %v483
    %834 = vmatmul.f32.gmra.mxu0 %v350
    %v835 = vpop.f32.mrf.mxu0
    %v836 = vadd.f32 0.0, %v835
    %837 = vdwg.mxu0
    %838 = vmatpush.msra.mxu0 %v607
    %839 = vmatpush.msra.mxu0 %v603
    %840 = vmatpush.msra.mxu0 %v599
    %841 = vmatpush.msra.mxu0 %v595
    %842 = vmatpush.msra.mxu0 %v591
    %843 = vmatpush.msra.mxu0 %v587
    %844 = vmatpush.msra.mxu0 %v583
    %845 = vmatpush.msra.mxu0 %v579
    %846 = vmatpush.msra.mxu0 %v575
    %847 = vmatpush.msra.mxu0 %v571
    %848 = vmatpush.msra.mxu0 %v567
    %849 = vmatpush.msra.mxu0 %v563
    %850 = vmatpush.msra.mxu0 %v559
    %851 = vmatpush.msra.mxu0 %v555
    %852 = vmatpush.msra.mxu0 %v551
    %853 = vmatpush.msra.mxu0 %v547
    %854 = vmatmul.f32.gmra.mxu0 %v351
    %v855 = vpop.f32.mrf.mxu0
    %v856 = vadd.f32 %v836, %v855
    %857 = vdwg.mxu0
    %858 = vmatpush.msra.mxu0 %v671
    %859 = vmatpush.msra.mxu0 %v667
    %860 = vmatpush.msra.mxu0 %v663
    %861 = vmatpush.msra.mxu0 %v659
    %862 = vmatpush.msra.mxu0 %v655
    %863 = vmatpush.msra.mxu0 %v651
    %864 = vmatpush.msra.mxu0 %v647
    %865 = vmatpush.msra.mxu0 %v643
    %866 = vmatpush.msra.mxu0 %v639
    %867 = vmatpush.msra.mxu0 %v635
    %868 = vmatpush.msra.mxu0 %v631
    %869 = vmatpush.msra.mxu0 %v627
    %870 = vmatpush.msra.mxu0 %v623
    %871 = vmatpush.msra.mxu0 %v619
    %872 = vmatpush.msra.mxu0 %v615
    %873 = vmatpush.msra.mxu0 %v611
    %874 = vmatmul.f32.gmra.mxu0 %v352
    %v875 = vpop.f32.mrf.mxu0
    %v876 = vadd.f32 %v856, %v875
    %877 = vdwg.mxu0
    %878 = vmatpush.msra.mxu0 %v735
    %879 = vmatpush.msra.mxu0 %v731
    %880 = vmatpush.msra.mxu0 %v727
    %881 = vmatpush.msra.mxu0 %v723
    %882 = vmatpush.msra.mxu0 %v719
    %883 = vmatpush.msra.mxu0 %v715
    %884 = vmatpush.msra.mxu0 %v711
    %885 = vmatpush.msra.mxu0 %v707
    %886 = vmatpush.msra.mxu0 %v703
    %887 = vmatpush.msra.mxu0 %v699
    %888 = vmatpush.msra.mxu0 %v695
    %889 = vmatpush.msra.mxu0 %v691
    %890 = vmatpush.msra.mxu0 %v687
    %891 = vmatpush.msra.mxu0 %v683
    %892 = vmatpush.msra.mxu0 %v679
    %893 = vmatpush.msra.mxu0 %v675
    %894 = vmatmul.f32.gmra.mxu0 %v353
    %v895 = vpop.f32.mrf.mxu0
    %v896 = vadd.f32 %v876, %v895
    %897 = vdwg.mxu0
    %898 = vmatpush.msra.mxu0 %v544
    %899 = vmatpush.msra.mxu0 %v540
    %900 = vmatpush.msra.mxu0 %v536
    %901 = vmatpush.msra.mxu0 %v532
    %902 = vmatpush.msra.mxu0 %v528
    %903 = vmatpush.msra.mxu0 %v524
    %904 = vmatpush.msra.mxu0 %v520
    %905 = vmatpush.msra.mxu0 %v516
    %906 = vmatpush.msra.mxu0 %v512
    %907 = vmatpush.msra.mxu0 %v508
    %908 = vmatpush.msra.mxu0 %v504
    %909 = vmatpush.msra.mxu0 %v500
    %910 = vmatpush.msra.mxu0 %v496
    %911 = vmatpush.msra.mxu0 %v492
    %912 = vmatpush.msra.mxu0 %v488
    %913 = vmatpush.msra.mxu0 %v484
    %914 = vmatmul.f32.gmra.mxu0 %v350
    %v915 = vpop.f32.mrf.mxu0
    %v916 = vadd.f32 0.0, %v915
    %917 = vdwg.mxu0
    %918 = vmatpush.msra.mxu0 %v608
    %919 = vmatpush.msra.mxu0 %v604
    %920 = vmatpush.msra.mxu0 %v600
    %921 = vmatpush.msra.mxu0 %v596
    %922 = vmatpush.msra.mxu0 %v592
    %923 = vmatpush.msra.mxu0 %v588
    %924 = vmatpush.msra.mxu0 %v584
    %925 = vmatpush.msra.mxu0 %v580
    %926 = vmatpush.msra.mxu0 %v576
    %927 = vmatpush.msra.mxu0 %v572
    %928 = vmatpush.msra.mxu0 %v568
    %929 = vmatpush.msra.mxu0 %v564
    %930 = vmatpush.msra.mxu0 %v560
    %931 = vmatpush.msra.mxu0 %v556
    %932 = vmatpush.msra.mxu0 %v552
    %933 = vmatpush.msra.mxu0 %v548
    %934 = vmatmul.f32.gmra.mxu0 %v351
    %v935 = vpop.f32.mrf.mxu0
    %v936 = vadd.f32 %v916, %v935
    %937 = vdwg.mxu0
    %938 = vmatpush.msra.mxu0 %v672
    %939 = vmatpush.msra.mxu0 %v668
    %940 = vmatpush.msra.mxu0 %v664
    %941 = vmatpush.msra.mxu0 %v660
    %942 = vmatpush.msra.mxu0 %v656
    %943 = vmatpush.msra.mxu0 %v652
    %944 = vmatpush.msra.mxu0 %v648
    %945 = vmatpush.msra.mxu0 %v644
    %946 = vmatpush.msra.mxu0 %v640
    %947 = vmatpush.msra.mxu0 %v636
    %948 = vmatpush.msra.mxu0 %v632
    %949 = vmatpush.msra.mxu0 %v628
    %950 = vmatpush.msra.mxu0 %v624
    %951 = vmatpush.msra.mxu0 %v620
    %952 = vmatpush.msra.mxu0 %v616
    %953 = vmatpush.msra.mxu0 %v612
    %954 = vmatmul.f32.gmra.mxu0 %v352
    %v955 = vpop.f32.mrf.mxu0
    %v956 = vadd.f32 %v936, %v955
    %957 = vdwg.mxu0
    %958 = vmatpush.msra.mxu0 %v736
    %959 = vmatpush.msra.mxu0 %v732
    %960 = vmatpush.msra.mxu0 %v728
    %961 = vmatpush.msra.mxu0 %v724
    %962 = vmatpush.msra.mxu0 %v720
    %963 = vmatpush.msra.mxu0 %v716
    %964 = vmatpush.msra.mxu0 %v712
    %965 = vmatpush.msra.mxu0 %v708
    %966 = vmatpush.msra.mxu0 %v704
    %967 = vmatpush.msra.mxu0 %v700
    %968 = vmatpush.msra.mxu0 %v696
    %969 = vmatpush.msra.mxu0 %v692
    %970 = vmatpush.msra.mxu0 %v688
    %971 = vmatpush.msra.mxu0 %v684
    %972 = vmatpush.msra.mxu0 %v680
    %973 = vmatpush.msra.mxu0 %v676
    %974 = vmatmul.f32.gmra.mxu0 %v353
    %v975 = vpop.f32.mrf.mxu0
    %v976 = vadd.f32 %v956, %v975
    %977 = vdwg.mxu0
    %978 = vmatpush.msra.mxu0 %v545
    %979 = vmatpush.msra.mxu0 %v541
    %980 = vmatpush.msra.mxu0 %v537
    %981 = vmatpush.msra.mxu0 %v533
    %982 = vmatpush.msra.mxu0 %v529
    %983 = vmatpush.msra.mxu0 %v525
    %984 = vmatpush.msra.mxu0 %v521
    %985 = vmatpush.msra.mxu0 %v517
    %986 = vmatpush.msra.mxu0 %v513
    %987 = vmatpush.msra.mxu0 %v509
    %988 = vmatpush.msra.mxu0 %v505
    %989 = vmatpush.msra.mxu0 %v501
    %990 = vmatpush.msra.mxu0 %v497
    %991 = vmatpush.msra.mxu0 %v493
    %992 = vmatpush.msra.mxu0 %v489
    %993 = vmatpush.msra.mxu0 %v485
    %994 = vmatmul.f32.gmra.mxu0 %v350
    %v995 = vpop.f32.mrf.mxu0
    %v996 = vadd.f32 0.0, %v995
    %997 = vdwg.mxu0
    %998 = vmatpush.msra.mxu0 %v609
    %999 = vmatpush.msra.mxu0 %v605
    %1000 = vmatpush.msra.mxu0 %v601
    %1001 = vmatpush.msra.mxu0 %v597
    %1002 = vmatpush.msra.mxu0 %v593
    %1003 = vmatpush.msra.mxu0 %v589
    %1004 = vmatpush.msra.mxu0 %v585
    %1005 = vmatpush.msra.mxu0 %v581
    %1006 = vmatpush.msra.mxu0 %v577
    %1007 = vmatpush.msra.mxu0 %v573
    %1008 = vmatpush.msra.mxu0 %v569
    %1009 = vmatpush.msra.mxu0 %v565
    %1010 = vmatpush.msra.mxu0 %v561
    %1011 = vmatpush.msra.mxu0 %v557
    %1012 = vmatpush.msra.mxu0 %v553
    %1013 = vmatpush.msra.mxu0 %v549
    %1014 = vmatmul.f32.gmra.mxu0 %v351
    %v1015 = vpop.f32.mrf.mxu0
    %v1016 = vadd.f32 %v996, %v1015
    %1017 = vdwg.mxu0
    %1018 = vmatpush.msra.mxu0 %v673
    %1019 = vmatpush.msra.mxu0 %v669
    %1020 = vmatpush.msra.mxu0 %v665
    %1021 = vmatpush.msra.mxu0 %v661
    %1022 = vmatpush.msra.mxu0 %v657
    %1023 = vmatpush.msra.mxu0 %v653
    %1024 = vmatpush.msra.mxu0 %v649
    %1025 = vmatpush.msra.mxu0 %v645
    %1026 = vmatpush.msra.mxu0 %v641
    %1027 = vmatpush.msra.mxu0 %v637
    %1028 = vmatpush.msra.mxu0 %v633
    %1029 = vmatpush.msra.mxu0 %v629
    %1030 = vmatpush.msra.mxu0 %v625
    %1031 = vmatpush.msra.mxu0 %v621
    %1032 = vmatpush.msra.mxu0 %v617
    %1033 = vmatpush.msra.mxu0 %v613
    %1034 = vmatmul.f32.gmra.mxu0 %v352
    %v1035 = vpop.f32.mrf.mxu0
    %v1036 = vadd.f32 %v1016, %v1035
    %1037 = vdwg.mxu0
    %1038 = vmatpush.msra.mxu0 %v737
    %1039 = vmatpush.msra.mxu0 %v733
    %1040 = vmatpush.msra.mxu0 %v729
    %1041 = vmatpush.msra.mxu0 %v725
    %1042 = vmatpush.msra.mxu0 %v721
    %1043 = vmatpush.msra.mxu0 %v717
    %1044 = vmatpush.msra.mxu0 %v713
    %1045 = vmatpush.msra.mxu0 %v709
    %1046 = vmatpush.msra.mxu0 %v705
    %1047 = vmatpush.msra.mxu0 %v701
    %1048 = vmatpush.msra.mxu0 %v697
    %1049 = vmatpush.msra.mxu0 %v693
    %1050 = vmatpush.msra.mxu0 %v689
    %1051 = vmatpush.msra.mxu0 %v685
    %1052 = vmatpush.msra.mxu0 %v681
    %1053 = vmatpush.msra.mxu0 %v677
    %1054 = vmatmul.f32.gmra.mxu0 %v353
    %v1055 = vpop.f32.mrf.mxu0
    %v1056 = vadd.f32 %v1036, %v1055
    %1057 = vdwg.mxu0
    %s1058 = scalar_lea.vmem %s4, 1
    %v1059 = vld [vmem:[%s1058] ss:$4 sm:$0xf]
    %s1060 = scalar_lea.vmem %s5, 1
    %v1061 = vld [vmem:[%s1060] ss:$4 sm:$0xf]
    %v1062 = vsel %vm162, %v816, 0.0
    %v1063 = vrot.slane %v1062, 4
    %v1064 = vadd.f32 %v1062, %v1063
    %v1065 = vrot.slane %v1064, 2
    %v1066 = vadd.f32 %v1064, %v1065
    %v1067 = vrot.slane %v1066, 1
    %v1068 = vadd.f32 %v1066, %v1067
    %v1069 = vsel %vm162, %v896, 0.0
    %v1070 = vrot.slane %v1069, 4
    %v1071 = vadd.f32 %v1069, %v1070
    %v1072 = vrot.slane %v1071, 2
    %v1073 = vadd.f32 %v1071, %v1072
    %v1074 = vrot.slane %v1073, 1
    %v1075 = vadd.f32 %v1073, %v1074
    %v1076 = vsel %vm162, %v976, 0.0
    %v1077 = vrot.slane %v1076, 4
    %v1078 = vadd.f32 %v1076, %v1077
    %v1079 = vrot.slane %v1078, 2
    %v1080 = vadd.f32 %v1078, %v1079
    %v1081 = vrot.slane %v1080, 1
    %v1082 = vadd.f32 %v1080, %v1081
    %v1083 = vsel %vm162, %v1056, 0.0
    %v1084 = vrot.slane %v1083, 4
    %v1085 = vadd.f32 %v1083, %v1084
    %v1086 = vrot.slane %v1085, 2
    %v1087 = vadd.f32 %v1085, %v1086
    %v1088 = vrot.slane %v1087, 1
    %v1089 = vadd.f32 %v1087, %v1088
    %v1090 = vmul.f32 %v1068, %v197
    %v1091 = vmul.f32 %v1075, %v197
    %v1092 = vmul.f32 %v1082, %v197
    %v1093 = vmul.f32 %v1089, %v197
    %v1094 = vsub.f32 %v816, %v1090
    %v1095 = vsub.f32 %v896, %v1091
    %v1096 = vsub.f32 %v976, %v1092
    %v1097 = vsub.f32 %v1056, %v1093
    %v1098 = vmul.f32 %v1094, %v1094
    %v1099 = vmul.f32 %v1095, %v1095
    %v1100 = vmul.f32 %v1096, %v1096
    %v1101 = vmul.f32 %v1097, %v1097
    %v1102 = vsel %vm162, %v1098, 0.0
    %v1103 = vrot.slane %v1102, 4
    %v1104 = vadd.f32 %v1102, %v1103
    %v1105 = vrot.slane %v1104, 2
    %v1106 = vadd.f32 %v1104, %v1105
    %v1107 = vrot.slane %v1106, 1
    %v1108 = vadd.f32 %v1106, %v1107
    %v1109 = vsel %vm162, %v1099, 0.0
    %v1110 = vrot.slane %v1109, 4
    %v1111 = vadd.f32 %v1109, %v1110
    %v1112 = vrot.slane %v1111, 2
    %v1113 = vadd.f32 %v1111, %v1112
    %v1114 = vrot.slane %v1113, 1
    %v1115 = vadd.f32 %v1113, %v1114
    %v1116 = vsel %vm162, %v1100, 0.0
    %v1117 = vrot.slane %v1116, 4
    %v1118 = vadd.f32 %v1116, %v1117
    %v1119 = vrot.slane %v1118, 2
    %v1120 = vadd.f32 %v1118, %v1119
    %v1121 = vrot.slane %v1120, 1
    %v1122 = vadd.f32 %v1120, %v1121
    %v1123 = vsel %vm162, %v1101, 0.0
    %v1124 = vrot.slane %v1123, 4
    %v1125 = vadd.f32 %v1123, %v1124
    %v1126 = vrot.slane %v1125, 2
    %v1127 = vadd.f32 %v1125, %v1126
    %v1128 = vrot.slane %v1127, 1
    %v1129 = vadd.f32 %v1127, %v1128
    %v1130 = vmul.f32 %v1108, %v197
    %v1131 = vmul.f32 %v1115, %v197
    %v1132 = vmul.f32 %v1122, %v197
    %v1133 = vmul.f32 %v1129, %v197
    %v1134 = vadd.f32 %v1130, 1e-05
    %v1135 = vadd.f32 %v1131, 1e-05
    %v1136 = vadd.f32 %v1132, 1e-05
    %v1137 = vadd.f32 %v1133, 1e-05
    %v1138 = vrsqrt.pop %v1134
    %v1139 = vmul.f32 %v1138, %v1134
    %v1140 = vmul.f32 %v1139, %v1138
    %v1141 = vmul.f32 0.5, %v1140
    %v1142 = vsub.f32 1.5, %v1141
    %v1143 = vmul.f32 %v1138, %v1142
    %vm1144 = vweird.f32 %v1134
    %vm1145 = vweird.f32 %v1138
    %vm1146 = vmor %vm1144, %vm1145
    %v1147 = vsel %vm1146, %v1138, %v1143
    %v1148 = vrsqrt.pop %v1135
    %v1149 = vmul.f32 %v1148, %v1135
    %v1150 = vmul.f32 %v1149, %v1148
    %v1151 = vmul.f32 0.5, %v1150
    %v1152 = vsub.f32 1.5, %v1151
    %v1153 = vmul.f32 %v1148, %v1152
    %vm1154 = vweird.f32 %v1135
    %vm1155 = vweird.f32 %v1148
    %vm1156 = vmor %vm1154, %vm1155
    %v1157 = vsel %vm1156, %v1148, %v1153
    %v1158 = vrsqrt.pop %v1136
    %v1159 = vmul.f32 %v1158, %v1136
    %v1160 = vmul.f32 %v1159, %v1158
    %v1161 = vmul.f32 0.5, %v1160
    %v1162 = vsub.f32 1.5, %v1161
    %v1163 = vmul.f32 %v1158, %v1162
    %vm1164 = vweird.f32 %v1136
    %vm1165 = vweird.f32 %v1158
    %vm1166 = vmor %vm1164, %vm1165
    %v1167 = vsel %vm1166, %v1158, %v1163
    %v1168 = vrsqrt.pop %v1137
    %v1169 = vmul.f32 %v1168, %v1137
    %v1170 = vmul.f32 %v1169, %v1168
    %v1171 = vmul.f32 0.5, %v1170
    %v1172 = vsub.f32 1.5, %v1171
    %v1173 = vmul.f32 %v1168, %v1172
    %vm1174 = vweird.f32 %v1137
    %vm1175 = vweird.f32 %v1168
    %vm1176 = vmor %vm1174, %vm1175
    %v1177 = vsel %vm1176, %v1168, %v1173
    %v1182 = vrot.slane %v1157, 7
    %v1183 = vrot.slane %v1167, 6
    %v1184 = vrot.slane %v1177, 5
    %v1185 = vsel %vm293, %v1147, %v1182
    %v1186 = vsel %vm295, %v1183, %v1184
    %v1187 = vsel %vm162, %v1185, %v1186
    %v1189 = vmul.f32 %v1059, %v1187
    %v1191 = vperm.slane %v1189, 0
    %v1192 = vperm.slane %v1189, 1
    %v1193 = vperm.slane %v1189, 2
    %v1194 = vperm.slane %v1189, 3
    %v1199 = vmul.f32 %v1090, %v1191
    %v1200 = vmul.f32 %v1091, %v1192
    %v1201 = vmul.f32 %v1092, %v1193
    %v1202 = vmul.f32 %v1093, %v1194
    %v1207 = vrot.slane %v1200, 7
    %v1208 = vrot.slane %v1201, 6
    %v1209 = vrot.slane %v1202, 5
    %v1210 = vsel %vm293, %v1199, %v1207
    %v1211 = vsel %vm295, %v1208, %v1209
    %v1212 = vsel %vm162, %v1210, %v1211
    %v1214 = vsub.f32 %v1061, %v1212
    %v1215 = vmul.f32 %v816, %v1191
    %v1216 = vmul.f32 %v896, %v1192
    %v1217 = vmul.f32 %v976, %v1193
    %v1218 = vmul.f32 %v1056, %v1194
    %v1220 = vperm.slane %v1214, 0
    %v1221 = vperm.slane %v1214, 1
    %v1222 = vperm.slane %v1214, 2
    %v1223 = vperm.slane %v1214, 3
    %v1228 = vadd.f32 %v1215, %v1220
    %v1229 = vadd.f32 %v1216, %v1221
    %v1230 = vadd.f32 %v1217, %v1222
    %v1231 = vadd.f32 %v1218, %v1223
    %vm1232 = vcmp.gt.f32.partialorder %v1228, 0.0
    %vm1233 = vcmp.gt.f32.partialorder %v1229, 0.0
    %vm1234 = vcmp.gt.f32.partialorder %v1230, 0.0
    %vm1235 = vcmp.gt.f32.partialorder %v1231, 0.0
    %v1236 = vmul.f32 %v1228, 0.01
    %v1237 = vmul.f32 %v1229, 0.01
    %v1238 = vmul.f32 %v1230, 0.01
    %v1239 = vmul.f32 %v1231, 0.01
    %v1240 = vsel %vm1232, %v1228, %v1236
    %v1241 = vsel %vm1233, %v1229, %v1237
    %v1242 = vsel %vm1234, %v1230, %v1238
    %v1243 = vsel %vm1235, %v1231, %v1239
    %v1244 = vld [vmem:[#allocation5] sm:$0xff]
    %v1245 = vld [vmem:[#allocation5 + $0x8] sm:$0xff]
    %v1246 = vld [vmem:[#allocation5 + $0x10] sm:$0xff]
    %v1247 = vld [vmem:[#allocation5 + $0x18] sm:$0xff]
    %v1248 = vld [vmem:[#allocation5 + $0x20] sm:$0xff]
    %v1249 = vld [vmem:[#allocation5 + $0x28] sm:$0xff]
    %v1250 = vld [vmem:[#allocation5 + $0x30] sm:$0xff]
    %v1251 = vld [vmem:[#allocation5 + $0x38] sm:$0xff]
    %v1252 = vld [vmem:[#allocation5 + $0x40] sm:$0xff]
    %v1253 = vld [vmem:[#allocation5 + $0x48] sm:$0xff]
    %v1254 = vld [vmem:[#allocation5 + $0x50] sm:$0xff]
    %v1255 = vld [vmem:[#allocation5 + $0x58] sm:$0xff]
    %v1256 = vld [vmem:[#allocation5 + $0x60] sm:$0xff]
    %v1257 = vld [vmem:[#allocation5 + $0x68] sm:$0xff]
    %v1258 = vld [vmem:[#allocation5 + $0x70] sm:$0xff]
    %v1259 = vld [vmem:[#allocation5 + $0x78] sm:$0xff]
    %v1260 = vld [vmem:[#allocation5 + $0x80] sm:$0xff]
    %v1261 = vld [vmem:[#allocation5 + $0x88] sm:$0xff]
    %v1262 = vld [vmem:[#allocation5 + $0x90] sm:$0xff]
    %v1263 = vld [vmem:[#allocation5 + $0x98] sm:$0xff]
    %v1264 = vld [vmem:[#allocation5 + $0xa0] sm:$0xff]
    %v1265 = vld [vmem:[#allocation5 + $0xa8] sm:$0xff]
    %v1266 = vld [vmem:[#allocation5 + $0xb0] sm:$0xff]
    %v1267 = vld [vmem:[#allocation5 + $0xb8] sm:$0xff]
    %v1268 = vld [vmem:[#allocation5 + $0xc0] sm:$0xff]
    %v1269 = vld [vmem:[#allocation5 + $0xc8] sm:$0xff]
    %v1270 = vld [vmem:[#allocation5 + $0xd0] sm:$0xff]
    %v1271 = vld [vmem:[#allocation5 + $0xd8] sm:$0xff]
    %v1272 = vld [vmem:[#allocation5 + $0xe0] sm:$0xff]
    %v1273 = vld [vmem:[#allocation5 + $0xe8] sm:$0xff]
    %v1274 = vld [vmem:[#allocation5 + $0xf0] sm:$0xff]
    %v1275 = vld [vmem:[#allocation5 + $0xf8] sm:$0xff]
    %v1276 = vld [vmem:[#allocation5 + $0x100] sm:$0xff]
    %v1277 = vld [vmem:[#allocation5 + $0x108] sm:$0xff]
    %v1278 = vld [vmem:[#allocation5 + $0x110] sm:$0xff]
    %v1279 = vld [vmem:[#allocation5 + $0x118] sm:$0xff]
    %v1280 = vld [vmem:[#allocation5 + $0x120] sm:$0xff]
    %v1281 = vld [vmem:[#allocation5 + $0x128] sm:$0xff]
    %v1282 = vld [vmem:[#allocation5 + $0x130] sm:$0xff]
    %v1283 = vld [vmem:[#allocation5 + $0x138] sm:$0xff]
    %v1284 = vld [vmem:[#allocation5 + $0x140] sm:$0xff]
    %v1285 = vld [vmem:[#allocation5 + $0x148] sm:$0xff]
    %v1286 = vld [vmem:[#allocation5 + $0x150] sm:$0xff]
    %v1287 = vld [vmem:[#allocation5 + $0x158] sm:$0xff]
    %v1288 = vld [vmem:[#allocation5 + $0x160] sm:$0xff]
    %v1289 = vld [vmem:[#allocation5 + $0x168] sm:$0xff]
    %v1290 = vld [vmem:[#allocation5 + $0x170] sm:$0xff]
    %v1291 = vld [vmem:[#allocation5 + $0x178] sm:$0xff]
    %v1292 = vld [vmem:[#allocation5 + $0x180] sm:$0xff]
    %v1293 = vld [vmem:[#allocation5 + $0x188] sm:$0xff]
    %v1294 = vld [vmem:[#allocation5 + $0x190] sm:$0xff]
    %v1295 = vld [vmem:[#allocation5 + $0x198] sm:$0xff]
    %v1296 = vld [vmem:[#allocation5 + $0x1a0] sm:$0xff]
    %v1297 = vld [vmem:[#allocation5 + $0x1a8] sm:$0xff]
    %v1298 = vld [vmem:[#allocation5 + $0x1b0] sm:$0xff]
    %v1299 = vld [vmem:[#allocation5 + $0x1b8] sm:$0xff]
    %v1300 = vld [vmem:[#allocation5 + $0x1c0] sm:$0xff]
    %v1301 = vld [vmem:[#allocation5 + $0x1c8] sm:$0xff]
    %v1302 = vld [vmem:[#allocation5 + $0x1d0] sm:$0xff]
    %v1303 = vld [vmem:[#allocation5 + $0x1d8] sm:$0xff]
    %v1304 = vld [vmem:[#allocation5 + $0x1e0] sm:$0xff]
    %v1305 = vld [vmem:[#allocation5 + $0x1e8] sm:$0xff]
    %v1306 = vld [vmem:[#allocation5 + $0x1f0] sm:$0xff]
    %v1307 = vld [vmem:[#allocation5 + $0x1f8] sm:$0xff]
    %v1308 = vld [vmem:[#allocation5 + $0x200] sm:$0xff]
    %v1309 = vld [vmem:[#allocation5 + $0x208] sm:$0xff]
    %v1310 = vld [vmem:[#allocation5 + $0x210] sm:$0xff]
    %v1311 = vld [vmem:[#allocation5 + $0x218] sm:$0xff]
    %v1312 = vld [vmem:[#allocation5 + $0x220] sm:$0xff]
    %v1313 = vld [vmem:[#allocation5 + $0x228] sm:$0xff]
    %v1314 = vld [vmem:[#allocation5 + $0x230] sm:$0xff]
    %v1315 = vld [vmem:[#allocation5 + $0x238] sm:$0xff]
    %v1316 = vld [vmem:[#allocation5 + $0x240] sm:$0xff]
    %v1317 = vld [vmem:[#allocation5 + $0x248] sm:$0xff]
    %v1318 = vld [vmem:[#allocation5 + $0x250] sm:$0xff]
    %v1319 = vld [vmem:[#allocation5 + $0x258] sm:$0xff]
    %v1320 = vld [vmem:[#allocation5 + $0x260] sm:$0xff]
    %v1321 = vld [vmem:[#allocation5 + $0x268] sm:$0xff]
    %v1322 = vld [vmem:[#allocation5 + $0x270] sm:$0xff]
    %v1323 = vld [vmem:[#allocation5 + $0x278] sm:$0xff]
    %v1324 = vld [vmem:[#allocation5 + $0x280] sm:$0xff]
    %v1325 = vld [vmem:[#allocation5 + $0x288] sm:$0xff]
    %v1326 = vld [vmem:[#allocation5 + $0x290] sm:$0xff]
    %v1327 = vld [vmem:[#allocation5 + $0x298] sm:$0xff]
    %v1328 = vld [vmem:[#allocation5 + $0x2a0] sm:$0xff]
    %v1329 = vld [vmem:[#allocation5 + $0x2a8] sm:$0xff]
    %v1330 = vld [vmem:[#allocation5 + $0x2b0] sm:$0xff]
    %v1331 = vld [vmem:[#allocation5 + $0x2b8] sm:$0xff]
    %v1332 = vld [vmem:[#allocation5 + $0x2c0] sm:$0xff]
    %v1333 = vld [vmem:[#allocation5 + $0x2c8] sm:$0xff]
    %v1334 = vld [vmem:[#allocation5 + $0x2d0] sm:$0xff]
    %v1335 = vld [vmem:[#allocation5 + $0x2d8] sm:$0xff]
    %v1336 = vld [vmem:[#allocation5 + $0x2e0] sm:$0xff]
    %v1337 = vld [vmem:[#allocation5 + $0x2e8] sm:$0xff]
    %v1338 = vld [vmem:[#allocation5 + $0x2f0] sm:$0xff]
    %v1339 = vld [vmem:[#allocation5 + $0x2f8] sm:$0xff]
    %v1340 = vld [vmem:[#allocation5 + $0x300] sm:$0xff]
    %v1341 = vld [vmem:[#allocation5 + $0x308] sm:$0xff]
    %v1342 = vld [vmem:[#allocation5 + $0x310] sm:$0xff]
    %v1343 = vld [vmem:[#allocation5 + $0x318] sm:$0xff]
    %v1344 = vld [vmem:[#allocation5 + $0x320] sm:$0xff]
    %v1345 = vld [vmem:[#allocation5 + $0x328] sm:$0xff]
    %v1346 = vld [vmem:[#allocation5 + $0x330] sm:$0xff]
    %v1347 = vld [vmem:[#allocation5 + $0x338] sm:$0xff]
    %v1348 = vld [vmem:[#allocation5 + $0x340] sm:$0xff]
    %v1349 = vld [vmem:[#allocation5 + $0x348] sm:$0xff]
    %v1350 = vld [vmem:[#allocation5 + $0x350] sm:$0xff]
    %v1351 = vld [vmem:[#allocation5 + $0x358] sm:$0xff]
    %v1352 = vld [vmem:[#allocation5 + $0x360] sm:$0xff]
    %v1353 = vld [vmem:[#allocation5 + $0x368] sm:$0xff]
    %v1354 = vld [vmem:[#allocation5 + $0x370] sm:$0xff]
    %v1355 = vld [vmem:[#allocation5 + $0x378] sm:$0xff]
    %v1356 = vld [vmem:[#allocation5 + $0x380] sm:$0xff]
    %v1357 = vld [vmem:[#allocation5 + $0x388] sm:$0xff]
    %v1358 = vld [vmem:[#allocation5 + $0x390] sm:$0xff]
    %v1359 = vld [vmem:[#allocation5 + $0x398] sm:$0xff]
    %v1360 = vld [vmem:[#allocation5 + $0x3a0] sm:$0xff]
    %v1361 = vld [vmem:[#allocation5 + $0x3a8] sm:$0xff]
    %v1362 = vld [vmem:[#allocation5 + $0x3b0] sm:$0xff]
    %v1363 = vld [vmem:[#allocation5 + $0x3b8] sm:$0xff]
    %v1364 = vld [vmem:[#allocation5 + $0x3c0] sm:$0xff]
    %v1365 = vld [vmem:[#allocation5 + $0x3c8] sm:$0xff]
    %v1366 = vld [vmem:[#allocation5 + $0x3d0] sm:$0xff]
    %v1367 = vld [vmem:[#allocation5 + $0x3d8] sm:$0xff]
    %v1368 = vld [vmem:[#allocation5 + $0x3e0] sm:$0xff]
    %v1369 = vld [vmem:[#allocation5 + $0x3e8] sm:$0xff]
    %v1370 = vld [vmem:[#allocation5 + $0x3f0] sm:$0xff]
    %v1371 = vld [vmem:[#allocation5 + $0x3f8] sm:$0xff]
    %v1372 = vunpack.c.l.bf16 %v1244
    %v1373 = vunpack.c.h.bf16 %v1244
    %v1374 = vunpack.c.l.bf16 %v1245
    %v1375 = vunpack.c.h.bf16 %v1245
    %v1376 = vunpack.c.l.bf16 %v1246
    %v1377 = vunpack.c.h.bf16 %v1246
    %v1378 = vunpack.c.l.bf16 %v1247
    %v1379 = vunpack.c.h.bf16 %v1247
    %v1380 = vunpack.c.l.bf16 %v1248
    %v1381 = vunpack.c.h.bf16 %v1248
    %v1382 = vunpack.c.l.bf16 %v1249
    %v1383 = vunpack.c.h.bf16 %v1249
    %v1384 = vunpack.c.l.bf16 %v1250
    %v1385 = vunpack.c.h.bf16 %v1250
    %v1386 = vunpack.c.l.bf16 %v1251
    %v1387 = vunpack.c.h.bf16 %v1251
    %v1388 = vunpack.c.l.bf16 %v1252
    %v1389 = vunpack.c.h.bf16 %v1252
    %v1390 = vunpack.c.l.bf16 %v1253
    %v1391 = vunpack.c.h.bf16 %v1253
    %v1392 = vunpack.c.l.bf16 %v1254
    %v1393 = vunpack.c.h.bf16 %v1254
    %v1394 = vunpack.c.l.bf16 %v1255
    %v1395 = vunpack.c.h.bf16 %v1255
    %v1396 = vunpack.c.l.bf16 %v1256
    %v1397 = vunpack.c.h.bf16 %v1256
    %v1398 = vunpack.c.l.bf16 %v1257
    %v1399 = vunpack.c.h.bf16 %v1257
    %v1400 = vunpack.c.l.bf16 %v1258
    %v1401 = vunpack.c.h.bf16 %v1258
    %v1402 = vunpack.c.l.bf16 %v1259
    %v1403 = vunpack.c.h.bf16 %v1259
    %v1404 = vunpack.c.l.bf16 %v1260
    %v1405 = vunpack.c.h.bf16 %v1260
    %v1406 = vunpack.c.l.bf16 %v1261
    %v1407 = vunpack.c.h.bf16 %v1261
    %v1408 = vunpack.c.l.bf16 %v1262
    %v1409 = vunpack.c.h.bf16 %v1262
    %v1410 = vunpack.c.l.bf16 %v1263
    %v1411 = vunpack.c.h.bf16 %v1263
    %v1412 = vunpack.c.l.bf16 %v1264
    %v1413 = vunpack.c.h.bf16 %v1264
    %v1414 = vunpack.c.l.bf16 %v1265
    %v1415 = vunpack.c.h.bf16 %v1265
    %v1416 = vunpack.c.l.bf16 %v1266
    %v1417 = vunpack.c.h.bf16 %v1266
    %v1418 = vunpack.c.l.bf16 %v1267
    %v1419 = vunpack.c.h.bf16 %v1267
    %v1420 = vunpack.c.l.bf16 %v1268
    %v1421 = vunpack.c.h.bf16 %v1268
    %v1422 = vunpack.c.l.bf16 %v1269
    %v1423 = vunpack.c.h.bf16 %v1269
    %v1424 = vunpack.c.l.bf16 %v1270
    %v1425 = vunpack.c.h.bf16 %v1270
    %v1426 = vunpack.c.l.bf16 %v1271
    %v1427 = vunpack.c.h.bf16 %v1271
    %v1428 = vunpack.c.l.bf16 %v1272
    %v1429 = vunpack.c.h.bf16 %v1272
    %v1430 = vunpack.c.l.bf16 %v1273
    %v1431 = vunpack.c.h.bf16 %v1273
    %v1432 = vunpack.c.l.bf16 %v1274
    %v1433 = vunpack.c.h.bf16 %v1274
    %v1434 = vunpack.c.l.bf16 %v1275
    %v1435 = vunpack.c.h.bf16 %v1275
    %v1436 = vunpack.c.l.bf16 %v1276
    %v1437 = vunpack.c.h.bf16 %v1276
    %v1438 = vunpack.c.l.bf16 %v1277
    %v1439 = vunpack.c.h.bf16 %v1277
    %v1440 = vunpack.c.l.bf16 %v1278
    %v1441 = vunpack.c.h.bf16 %v1278
    %v1442 = vunpack.c.l.bf16 %v1279
    %v1443 = vunpack.c.h.bf16 %v1279
    %v1444 = vunpack.c.l.bf16 %v1280
    %v1445 = vunpack.c.h.bf16 %v1280
    %v1446 = vunpack.c.l.bf16 %v1281
    %v1447 = vunpack.c.h.bf16 %v1281
    %v1448 = vunpack.c.l.bf16 %v1282
    %v1449 = vunpack.c.h.bf16 %v1282
    %v1450 = vunpack.c.l.bf16 %v1283
    %v1451 = vunpack.c.h.bf16 %v1283
    %v1452 = vunpack.c.l.bf16 %v1284
    %v1453 = vunpack.c.h.bf16 %v1284
    %v1454 = vunpack.c.l.bf16 %v1285
    %v1455 = vunpack.c.h.bf16 %v1285
    %v1456 = vunpack.c.l.bf16 %v1286
    %v1457 = vunpack.c.h.bf16 %v1286
    %v1458 = vunpack.c.l.bf16 %v1287
    %v1459 = vunpack.c.h.bf16 %v1287
    %v1460 = vunpack.c.l.bf16 %v1288
    %v1461 = vunpack.c.h.bf16 %v1288
    %v1462 = vunpack.c.l.bf16 %v1289
    %v1463 = vunpack.c.h.bf16 %v1289
    %v1464 = vunpack.c.l.bf16 %v1290
    %v1465 = vunpack.c.h.bf16 %v1290
    %v1466 = vunpack.c.l.bf16 %v1291
    %v1467 = vunpack.c.h.bf16 %v1291
    %v1468 = vunpack.c.l.bf16 %v1292
    %v1469 = vunpack.c.h.bf16 %v1292
    %v1470 = vunpack.c.l.bf16 %v1293
    %v1471 = vunpack.c.h.bf16 %v1293
    %v1472 = vunpack.c.l.bf16 %v1294
    %v1473 = vunpack.c.h.bf16 %v1294
    %v1474 = vunpack.c.l.bf16 %v1295
    %v1475 = vunpack.c.h.bf16 %v1295
    %v1476 = vunpack.c.l.bf16 %v1296
    %v1477 = vunpack.c.h.bf16 %v1296
    %v1478 = vunpack.c.l.bf16 %v1297
    %v1479 = vunpack.c.h.bf16 %v1297
    %v1480 = vunpack.c.l.bf16 %v1298
    %v1481 = vunpack.c.h.bf16 %v1298
    %v1482 = vunpack.c.l.bf16 %v1299
    %v1483 = vunpack.c.h.bf16 %v1299
    %v1484 = vunpack.c.l.bf16 %v1300
    %v1485 = vunpack.c.h.bf16 %v1300
    %v1486 = vunpack.c.l.bf16 %v1301
    %v1487 = vunpack.c.h.bf16 %v1301
    %v1488 = vunpack.c.l.bf16 %v1302
    %v1489 = vunpack.c.h.bf16 %v1302
    %v1490 = vunpack.c.l.bf16 %v1303
    %v1491 = vunpack.c.h.bf16 %v1303
    %v1492 = vunpack.c.l.bf16 %v1304
    %v1493 = vunpack.c.h.bf16 %v1304
    %v1494 = vunpack.c.l.bf16 %v1305
    %v1495 = vunpack.c.h.bf16 %v1305
    %v1496 = vunpack.c.l.bf16 %v1306
    %v1497 = vunpack.c.h.bf16 %v1306
    %v1498 = vunpack.c.l.bf16 %v1307
    %v1499 = vunpack.c.h.bf16 %v1307
    %v1500 = vunpack.c.l.bf16 %v1308
    %v1501 = vunpack.c.h.bf16 %v1308
    %v1502 = vunpack.c.l.bf16 %v1309
    %v1503 = vunpack.c.h.bf16 %v1309
    %v1504 = vunpack.c.l.bf16 %v1310
    %v1505 = vunpack.c.h.bf16 %v1310
    %v1506 = vunpack.c.l.bf16 %v1311
    %v1507 = vunpack.c.h.bf16 %v1311
    %v1508 = vunpack.c.l.bf16 %v1312
    %v1509 = vunpack.c.h.bf16 %v1312
    %v1510 = vunpack.c.l.bf16 %v1313
    %v1511 = vunpack.c.h.bf16 %v1313
    %v1512 = vunpack.c.l.bf16 %v1314
    %v1513 = vunpack.c.h.bf16 %v1314
    %v1514 = vunpack.c.l.bf16 %v1315
    %v1515 = vunpack.c.h.bf16 %v1315
    %v1516 = vunpack.c.l.bf16 %v1316
    %v1517 = vunpack.c.h.bf16 %v1316
    %v1518 = vunpack.c.l.bf16 %v1317
    %v1519 = vunpack.c.h.bf16 %v1317
    %v1520 = vunpack.c.l.bf16 %v1318
    %v1521 = vunpack.c.h.bf16 %v1318
    %v1522 = vunpack.c.l.bf16 %v1319
    %v1523 = vunpack.c.h.bf16 %v1319
    %v1524 = vunpack.c.l.bf16 %v1320
    %v1525 = vunpack.c.h.bf16 %v1320
    %v1526 = vunpack.c.l.bf16 %v1321
    %v1527 = vunpack.c.h.bf16 %v1321
    %v1528 = vunpack.c.l.bf16 %v1322
    %v1529 = vunpack.c.h.bf16 %v1322
    %v1530 = vunpack.c.l.bf16 %v1323
    %v1531 = vunpack.c.h.bf16 %v1323
    %v1532 = vunpack.c.l.bf16 %v1324
    %v1533 = vunpack.c.h.bf16 %v1324
    %v1534 = vunpack.c.l.bf16 %v1325
    %v1535 = vunpack.c.h.bf16 %v1325
    %v1536 = vunpack.c.l.bf16 %v1326
    %v1537 = vunpack.c.h.bf16 %v1326
    %v1538 = vunpack.c.l.bf16 %v1327
    %v1539 = vunpack.c.h.bf16 %v1327
    %v1540 = vunpack.c.l.bf16 %v1328
    %v1541 = vunpack.c.h.bf16 %v1328
    %v1542 = vunpack.c.l.bf16 %v1329
    %v1543 = vunpack.c.h.bf16 %v1329
    %v1544 = vunpack.c.l.bf16 %v1330
    %v1545 = vunpack.c.h.bf16 %v1330
    %v1546 = vunpack.c.l.bf16 %v1331
    %v1547 = vunpack.c.h.bf16 %v1331
    %v1548 = vunpack.c.l.bf16 %v1332
    %v1549 = vunpack.c.h.bf16 %v1332
    %v1550 = vunpack.c.l.bf16 %v1333
    %v1551 = vunpack.c.h.bf16 %v1333
    %v1552 = vunpack.c.l.bf16 %v1334
    %v1553 = vunpack.c.h.bf16 %v1334
    %v1554 = vunpack.c.l.bf16 %v1335
    %v1555 = vunpack.c.h.bf16 %v1335
    %v1556 = vunpack.c.l.bf16 %v1336
    %v1557 = vunpack.c.h.bf16 %v1336
    %v1558 = vunpack.c.l.bf16 %v1337
    %v1559 = vunpack.c.h.bf16 %v1337
    %v1560 = vunpack.c.l.bf16 %v1338
    %v1561 = vunpack.c.h.bf16 %v1338
    %v1562 = vunpack.c.l.bf16 %v1339
    %v1563 = vunpack.c.h.bf16 %v1339
    %v1564 = vunpack.c.l.bf16 %v1340
    %v1565 = vunpack.c.h.bf16 %v1340
    %v1566 = vunpack.c.l.bf16 %v1341
    %v1567 = vunpack.c.h.bf16 %v1341
    %v1568 = vunpack.c.l.bf16 %v1342
    %v1569 = vunpack.c.h.bf16 %v1342
    %v1570 = vunpack.c.l.bf16 %v1343
    %v1571 = vunpack.c.h.bf16 %v1343
    %v1572 = vunpack.c.l.bf16 %v1344
    %v1573 = vunpack.c.h.bf16 %v1344
    %v1574 = vunpack.c.l.bf16 %v1345
    %v1575 = vunpack.c.h.bf16 %v1345
    %v1576 = vunpack.c.l.bf16 %v1346
    %v1577 = vunpack.c.h.bf16 %v1346
    %v1578 = vunpack.c.l.bf16 %v1347
    %v1579 = vunpack.c.h.bf16 %v1347
    %v1580 = vunpack.c.l.bf16 %v1348
    %v1581 = vunpack.c.h.bf16 %v1348
    %v1582 = vunpack.c.l.bf16 %v1349
    %v1583 = vunpack.c.h.bf16 %v1349
    %v1584 = vunpack.c.l.bf16 %v1350
    %v1585 = vunpack.c.h.bf16 %v1350
    %v1586 = vunpack.c.l.bf16 %v1351
    %v1587 = vunpack.c.h.bf16 %v1351
    %v1588 = vunpack.c.l.bf16 %v1352
    %v1589 = vunpack.c.h.bf16 %v1352
    %v1590 = vunpack.c.l.bf16 %v1353
    %v1591 = vunpack.c.h.bf16 %v1353
    %v1592 = vunpack.c.l.bf16 %v1354
    %v1593 = vunpack.c.h.bf16 %v1354
    %v1594 = vunpack.c.l.bf16 %v1355
    %v1595 = vunpack.c.h.bf16 %v1355
    %v1596 = vunpack.c.l.bf16 %v1356
    %v1597 = vunpack.c.h.bf16 %v1356
    %v1598 = vunpack.c.l.bf16 %v1357
    %v1599 = vunpack.c.h.bf16 %v1357
    %v1600 = vunpack.c.l.bf16 %v1358
    %v1601 = vunpack.c.h.bf16 %v1358
    %v1602 = vunpack.c.l.bf16 %v1359
    %v1603 = vunpack.c.h.bf16 %v1359
    %v1604 = vunpack.c.l.bf16 %v1360
    %v1605 = vunpack.c.h.bf16 %v1360
    %v1606 = vunpack.c.l.bf16 %v1361
    %v1607 = vunpack.c.h.bf16 %v1361
    %v1608 = vunpack.c.l.bf16 %v1362
    %v1609 = vunpack.c.h.bf16 %v1362
    %v1610 = vunpack.c.l.bf16 %v1363
    %v1611 = vunpack.c.h.bf16 %v1363
    %v1612 = vunpack.c.l.bf16 %v1364
    %v1613 = vunpack.c.h.bf16 %v1364
    %v1614 = vunpack.c.l.bf16 %v1365
    %v1615 = vunpack.c.h.bf16 %v1365
    %v1616 = vunpack.c.l.bf16 %v1366
    %v1617 = vunpack.c.h.bf16 %v1366
    %v1618 = vunpack.c.l.bf16 %v1367
    %v1619 = vunpack.c.h.bf16 %v1367
    %v1620 = vunpack.c.l.bf16 %v1368
    %v1621 = vunpack.c.h.bf16 %v1368
    %v1622 = vunpack.c.l.bf16 %v1369
    %v1623 = vunpack.c.h.bf16 %v1369
    %v1624 = vunpack.c.l.bf16 %v1370
    %v1625 = vunpack.c.h.bf16 %v1370
    %v1626 = vunpack.c.l.bf16 %v1371
    %v1627 = vunpack.c.h.bf16 %v1371
    %1628 = vmatpush.msra.mxu0 %v1432
    %1629 = vmatpush.msra.mxu0 %v1428
    %1630 = vmatpush.msra.mxu0 %v1424
    %1631 = vmatpush.msra.mxu0 %v1420
    %1632 = vmatpush.msra.mxu0 %v1416
    %1633 = vmatpush.msra.mxu0 %v1412
    %1634 = vmatpush.msra.mxu0 %v1408
    %1635 = vmatpush.msra.mxu0 %v1404
    %1636 = vmatpush.msra.mxu0 %v1400
    %1637 = vmatpush.msra.mxu0 %v1396
    %1638 = vmatpush.msra.mxu0 %v1392
    %1639 = vmatpush.msra.mxu0 %v1388
    %1640 = vmatpush.msra.mxu0 %v1384
    %1641 = vmatpush.msra.mxu0 %v1380
    %1642 = vmatpush.msra.mxu0 %v1376
    %1643 = vmatpush.msra.mxu0 %v1372
    %1644 = vmatmul.f32.gmra.mxu0 %v1240
    %v1645 = vpop.f32.mrf.mxu0
    %v1646 = vadd.f32 0.0, %v1645
    %1647 = vdwg.mxu0
    %1648 = vmatpush.msra.mxu0 %v1496
    %1649 = vmatpush.msra.mxu0 %v1492
    %1650 = vmatpush.msra.mxu0 %v1488
    %1651 = vmatpush.msra.mxu0 %v1484
    %1652 = vmatpush.msra.mxu0 %v1480
    %1653 = vmatpush.msra.mxu0 %v1476
    %1654 = vmatpush.msra.mxu0 %v1472
    %1655 = vmatpush.msra.mxu0 %v1468
    %1656 = vmatpush.msra.mxu0 %v1464
    %1657 = vmatpush.msra.mxu0 %v1460
    %1658 = vmatpush.msra.mxu0 %v1456
    %1659 = vmatpush.msra.mxu0 %v1452
    %1660 = vmatpush.msra.mxu0 %v1448
    %1661 = vmatpush.msra.mxu0 %v1444
    %1662 = vmatpush.msra.mxu0 %v1440
    %1663 = vmatpush.msra.mxu0 %v1436
    %1664 = vmatmul.f32.gmra.mxu0 %v1241
    %v1665 = vpop.f32.mrf.mxu0
    %v1666 = vadd.f32 %v1646, %v1665
    %1667 = vdwg.mxu0
    %1668 = vmatpush.msra.mxu0 %v1560
    %1669 = vmatpush.msra.mxu0 %v1556
    %1670 = vmatpush.msra.mxu0 %v1552
    %1671 = vmatpush.msra.mxu0 %v1548
    %1672 = vmatpush.msra.mxu0 %v1544
    %1673 = vmatpush.msra.mxu0 %v1540
    %1674 = vmatpush.msra.mxu0 %v1536
    %1675 = vmatpush.msra.mxu0 %v1532
    %1676 = vmatpush.msra.mxu0 %v1528
    %1677 = vmatpush.msra.mxu0 %v1524
    %1678 = vmatpush.msra.mxu0 %v1520
    %1679 = vmatpush.msra.mxu0 %v1516
    %1680 = vmatpush.msra.mxu0 %v1512
    %1681 = vmatpush.msra.mxu0 %v1508
    %1682 = vmatpush.msra.mxu0 %v1504
    %1683 = vmatpush.msra.mxu0 %v1500
    %1684 = vmatmul.f32.gmra.mxu0 %v1242
    %v1685 = vpop.f32.mrf.mxu0
    %v1686 = vadd.f32 %v1666, %v1685
    %1687 = vdwg.mxu0
    %1688 = vmatpush.msra.mxu0 %v1624
    %1689 = vmatpush.msra.mxu0 %v1620
    %1690 = vmatpush.msra.mxu0 %v1616
    %1691 = vmatpush.msra.mxu0 %v1612
    %1692 = vmatpush.msra.mxu0 %v1608
    %1693 = vmatpush.msra.mxu0 %v1604
    %1694 = vmatpush.msra.mxu0 %v1600
    %1695 = vmatpush.msra.mxu0 %v1596
    %1696 = vmatpush.msra.mxu0 %v1592
    %1697 = vmatpush.msra.mxu0 %v1588
    %1698 = vmatpush.msra.mxu0 %v1584
    %1699 = vmatpush.msra.mxu0 %v1580
    %1700 = vmatpush.msra.mxu0 %v1576
    %1701 = vmatpush.msra.mxu0 %v1572
    %1702 = vmatpush.msra.mxu0 %v1568
    %1703 = vmatpush.msra.mxu0 %v1564
    %1704 = vmatmul.f32.gmra.mxu0 %v1243
    %v1705 = vpop.f32.mrf.mxu0
    %v1706 = vadd.f32 %v1686, %v1705
    %1707 = vdwg.mxu0
    %1708 = vmatpush.msra.mxu0 %v1433
    %1709 = vmatpush.msra.mxu0 %v1429
    %1710 = vmatpush.msra.mxu0 %v1425
    %1711 = vmatpush.msra.mxu0 %v1421
    %1712 = vmatpush.msra.mxu0 %v1417
    %1713 = vmatpush.msra.mxu0 %v1413
    %1714 = vmatpush.msra.mxu0 %v1409
    %1715 = vmatpush.msra.mxu0 %v1405
    %1716 = vmatpush.msra.mxu0 %v1401
    %1717 = vmatpush.msra.mxu0 %v1397
    %1718 = vmatpush.msra.mxu0 %v1393
    %1719 = vmatpush.msra.mxu0 %v1389
    %1720 = vmatpush.msra.mxu0 %v1385
    %1721 = vmatpush.msra.mxu0 %v1381
    %1722 = vmatpush.msra.mxu0 %v1377
    %1723 = vmatpush.msra.mxu0 %v1373
    %1724 = vmatmul.f32.gmra.mxu0 %v1240
    %v1725 = vpop.f32.mrf.mxu0
    %v1726 = vadd.f32 0.0, %v1725
    %1727 = vdwg.mxu0
    %1728 = vmatpush.msra.mxu0 %v1497
    %1729 = vmatpush.msra.mxu0 %v1493
    %1730 = vmatpush.msra.mxu0 %v1489
    %1731 = vmatpush.msra.mxu0 %v1485
    %1732 = vmatpush.msra.mxu0 %v1481
    %1733 = vmatpush.msra.mxu0 %v1477
    %1734 = vmatpush.msra.mxu0 %v1473
    %1735 = vmatpush.msra.mxu0 %v1469
    %1736 = vmatpush.msra.mxu0 %v1465
    %1737 = vmatpush.msra.mxu0 %v1461
    %1738 = vmatpush.msra.mxu0 %v1457
    %1739 = vmatpush.msra.mxu0 %v1453
    %1740 = vmatpush.msra.mxu0 %v1449
    %1741 = vmatpush.msra.mxu0 %v1445
    %1742 = vmatpush.msra.mxu0 %v1441
    %1743 = vmatpush.msra.mxu0 %v1437
    %1744 = vmatmul.f32.gmra.mxu0 %v1241
    %v1745 = vpop.f32.mrf.mxu0
    %v1746 = vadd.f32 %v1726, %v1745
    %1747 = vdwg.mxu0
    %1748 = vmatpush.msra.mxu0 %v1561
    %1749 = vmatpush.msra.mxu0 %v1557
    %1750 = vmatpush.msra.mxu0 %v1553
    %1751 = vmatpush.msra.mxu0 %v1549
    %1752 = vmatpush.msra.mxu0 %v1545
    %1753 = vmatpush.msra.mxu0 %v1541
    %1754 = vmatpush.msra.mxu0 %v1537
    %1755 = vmatpush.msra.mxu0 %v1533
    %1756 = vmatpush.msra.mxu0 %v1529
    %1757 = vmatpush.msra.mxu0 %v1525
    %1758 = vmatpush.msra.mxu0 %v1521
    %1759 = vmatpush.msra.mxu0 %v1517
    %1760 = vmatpush.msra.mxu0 %v1513
    %1761 = vmatpush.msra.mxu0 %v1509
    %1762 = vmatpush.msra.mxu0 %v1505
    %1763 = vmatpush.msra.mxu0 %v1501
    %1764 = vmatmul.f32.gmra.mxu0 %v1242
    %v1765 = vpop.f32.mrf.mxu0
    %v1766 = vadd.f32 %v1746, %v1765
    %1767 = vdwg.mxu0
    %1768 = vmatpush.msra.mxu0 %v1625
    %1769 = vmatpush.msra.mxu0 %v1621
    %1770 = vmatpush.msra.mxu0 %v1617
    %1771 = vmatpush.msra.mxu0 %v1613
    %1772 = vmatpush.msra.mxu0 %v1609
    %1773 = vmatpush.msra.mxu0 %v1605
    %1774 = vmatpush.msra.mxu0 %v1601
    %1775 = vmatpush.msra.mxu0 %v1597
    %1776 = vmatpush.msra.mxu0 %v1593
    %1777 = vmatpush.msra.mxu0 %v1589
    %1778 = vmatpush.msra.mxu0 %v1585
    %1779 = vmatpush.msra.mxu0 %v1581
    %1780 = vmatpush.msra.mxu0 %v1577
    %1781 = vmatpush.msra.mxu0 %v1573
    %1782 = vmatpush.msra.mxu0 %v1569
    %1783 = vmatpush.msra.mxu0 %v1565
    %1784 = vmatmul.f32.gmra.mxu0 %v1243
    %v1785 = vpop.f32.mrf.mxu0
    %v1786 = vadd.f32 %v1766, %v1785
    %1787 = vdwg.mxu0
    %1788 = vmatpush.msra.mxu0 %v1434
    %1789 = vmatpush.msra.mxu0 %v1430
    %1790 = vmatpush.msra.mxu0 %v1426
    %1791 = vmatpush.msra.mxu0 %v1422
    %1792 = vmatpush.msra.mxu0 %v1418
    %1793 = vmatpush.msra.mxu0 %v1414
    %1794 = vmatpush.msra.mxu0 %v1410
    %1795 = vmatpush.msra.mxu0 %v1406
    %1796 = vmatpush.msra.mxu0 %v1402
    %1797 = vmatpush.msra.mxu0 %v1398
    %1798 = vmatpush.msra.mxu0 %v1394
    %1799 = vmatpush.msra.mxu0 %v1390
    %1800 = vmatpush.msra.mxu0 %v1386
    %1801 = vmatpush.msra.mxu0 %v1382
    %1802 = vmatpush.msra.mxu0 %v1378
    %1803 = vmatpush.msra.mxu0 %v1374
    %1804 = vmatmul.f32.gmra.mxu0 %v1240
    %v1805 = vpop.f32.mrf.mxu0
    %v1806 = vadd.f32 0.0, %v1805
    %1807 = vdwg.mxu0
    %1808 = vmatpush.msra.mxu0 %v1498
    %1809 = vmatpush.msra.mxu0 %v1494
    %1810 = vmatpush.msra.mxu0 %v1490
    %1811 = vmatpush.msra.mxu0 %v1486
    %1812 = vmatpush.msra.mxu0 %v1482
    %1813 = vmatpush.msra.mxu0 %v1478
    %1814 = vmatpush.msra.mxu0 %v1474
    %1815 = vmatpush.msra.mxu0 %v1470
    %1816 = vmatpush.msra.mxu0 %v1466
    %1817 = vmatpush.msra.mxu0 %v1462
    %1818 = vmatpush.msra.mxu0 %v1458
    %1819 = vmatpush.msra.mxu0 %v1454
    %1820 = vmatpush.msra.mxu0 %v1450
    %1821 = vmatpush.msra.mxu0 %v1446
    %1822 = vmatpush.msra.mxu0 %v1442
    %1823 = vmatpush.msra.mxu0 %v1438
    %1824 = vmatmul.f32.gmra.mxu0 %v1241
    %v1825 = vpop.f32.mrf.mxu0
    %v1826 = vadd.f32 %v1806, %v1825
    %1827 = vdwg.mxu0
    %1828 = vmatpush.msra.mxu0 %v1562
    %1829 = vmatpush.msra.mxu0 %v1558
    %1830 = vmatpush.msra.mxu0 %v1554
    %1831 = vmatpush.msra.mxu0 %v1550
    %1832 = vmatpush.msra.mxu0 %v1546
    %1833 = vmatpush.msra.mxu0 %v1542
    %1834 = vmatpush.msra.mxu0 %v1538
    %1835 = vmatpush.msra.mxu0 %v1534
    %1836 = vmatpush.msra.mxu0 %v1530
    %1837 = vmatpush.msra.mxu0 %v1526
    %1838 = vmatpush.msra.mxu0 %v1522
    %1839 = vmatpush.msra.mxu0 %v1518
    %1840 = vmatpush.msra.mxu0 %v1514
    %1841 = vmatpush.msra.mxu0 %v1510
    %1842 = vmatpush.msra.mxu0 %v1506
    %1843 = vmatpush.msra.mxu0 %v1502
    %1844 = vmatmul.f32.gmra.mxu0 %v1242
    %v1845 = vpop.f32.mrf.mxu0
    %v1846 = vadd.f32 %v1826, %v1845
    %1847 = vdwg.mxu0
    %1848 = vmatpush.msra.mxu0 %v1626
    %1849 = vmatpush.msra.mxu0 %v1622
    %1850 = vmatpush.msra.mxu0 %v1618
    %1851 = vmatpush.msra.mxu0 %v1614
    %1852 = vmatpush.msra.mxu0 %v1610
    %1853 = vmatpush.msra.mxu0 %v1606
    %1854 = vmatpush.msra.mxu0 %v1602
    %1855 = vmatpush.msra.mxu0 %v1598
    %1856 = vmatpush.msra.mxu0 %v1594
    %1857 = vmatpush.msra.mxu0 %v1590
    %1858 = vmatpush.msra.mxu0 %v1586
    %1859 = vmatpush.msra.mxu0 %v1582
    %1860 = vmatpush.msra.mxu0 %v1578
    %1861 = vmatpush.msra.mxu0 %v1574
    %1862 = vmatpush.msra.mxu0 %v1570
    %1863 = vmatpush.msra.mxu0 %v1566
    %1864 = vmatmul.f32.gmra.mxu0 %v1243
    %v1865 = vpop.f32.mrf.mxu0
    %v1866 = vadd.f32 %v1846, %v1865
    %1867 = vdwg.mxu0
    %1868 = vmatpush.msra.mxu0 %v1435
    %1869 = vmatpush.msra.mxu0 %v1431
    %1870 = vmatpush.msra.mxu0 %v1427
    %1871 = vmatpush.msra.mxu0 %v1423
    %1872 = vmatpush.msra.mxu0 %v1419
    %1873 = vmatpush.msra.mxu0 %v1415
    %1874 = vmatpush.msra.mxu0 %v1411
    %1875 = vmatpush.msra.mxu0 %v1407
    %1876 = vmatpush.msra.mxu0 %v1403
    %1877 = vmatpush.msra.mxu0 %v1399
    %1878 = vmatpush.msra.mxu0 %v1395
    %1879 = vmatpush.msra.mxu0 %v1391
    %1880 = vmatpush.msra.mxu0 %v1387
    %1881 = vmatpush.msra.mxu0 %v1383
    %1882 = vmatpush.msra.mxu0 %v1379
    %1883 = vmatpush.msra.mxu0 %v1375
    %1884 = vmatmul.f32.gmra.mxu0 %v1240
    %v1885 = vpop.f32.mrf.mxu0
    %v1886 = vadd.f32 0.0, %v1885
    %1887 = vdwg.mxu0
    %1888 = vmatpush.msra.mxu0 %v1499
    %1889 = vmatpush.msra.mxu0 %v1495
    %1890 = vmatpush.msra.mxu0 %v1491
    %1891 = vmatpush.msra.mxu0 %v1487
    %1892 = vmatpush.msra.mxu0 %v1483
    %1893 = vmatpush.msra.mxu0 %v1479
    %1894 = vmatpush.msra.mxu0 %v1475
    %1895 = vmatpush.msra.mxu0 %v1471
    %1896 = vmatpush.msra.mxu0 %v1467
    %1897 = vmatpush.msra.mxu0 %v1463
    %1898 = vmatpush.msra.mxu0 %v1459
    %1899 = vmatpush.msra.mxu0 %v1455
    %1900 = vmatpush.msra.mxu0 %v1451
    %1901 = vmatpush.msra.mxu0 %v1447
    %1902 = vmatpush.msra.mxu0 %v1443
    %1903 = vmatpush.msra.mxu0 %v1439
    %1904 = vmatmul.f32.gmra.mxu0 %v1241
    %v1905 = vpop.f32.mrf.mxu0
    %v1906 = vadd.f32 %v1886, %v1905
    %1907 = vdwg.mxu0
    %1908 = vmatpush.msra.mxu0 %v1563
    %1909 = vmatpush.msra.mxu0 %v1559
    %1910 = vmatpush.msra.mxu0 %v1555
    %1911 = vmatpush.msra.mxu0 %v1551
    %1912 = vmatpush.msra.mxu0 %v1547
    %1913 = vmatpush.msra.mxu0 %v1543
    %1914 = vmatpush.msra.mxu0 %v1539
    %1915 = vmatpush.msra.mxu0 %v1535
    %1916 = vmatpush.msra.mxu0 %v1531
    %1917 = vmatpush.msra.mxu0 %v1527
    %1918 = vmatpush.msra.mxu0 %v1523
    %1919 = vmatpush.msra.mxu0 %v1519
    %1920 = vmatpush.msra.mxu0 %v1515
    %1921 = vmatpush.msra.mxu0 %v1511
    %1922 = vmatpush.msra.mxu0 %v1507
    %1923 = vmatpush.msra.mxu0 %v1503
    %1924 = vmatmul.f32.gmra.mxu0 %v1242
    %v1925 = vpop.f32.mrf.mxu0
    %v1926 = vadd.f32 %v1906, %v1925
    %1927 = vdwg.mxu0
    %1928 = vmatpush.msra.mxu0 %v1627
    %1929 = vmatpush.msra.mxu0 %v1623
    %1930 = vmatpush.msra.mxu0 %v1619
    %1931 = vmatpush.msra.mxu0 %v1615
    %1932 = vmatpush.msra.mxu0 %v1611
    %1933 = vmatpush.msra.mxu0 %v1607
    %1934 = vmatpush.msra.mxu0 %v1603
    %1935 = vmatpush.msra.mxu0 %v1599
    %1936 = vmatpush.msra.mxu0 %v1595
    %1937 = vmatpush.msra.mxu0 %v1591
    %1938 = vmatpush.msra.mxu0 %v1587
    %1939 = vmatpush.msra.mxu0 %v1583
    %1940 = vmatpush.msra.mxu0 %v1579
    %1941 = vmatpush.msra.mxu0 %v1575
    %1942 = vmatpush.msra.mxu0 %v1571
    %1943 = vmatpush.msra.mxu0 %v1567
    %1944 = vmatmul.f32.gmra.mxu0 %v1243
    %v1945 = vpop.f32.mrf.mxu0
    %v1946 = vadd.f32 %v1926, %v1945
    %1947 = vdwg.mxu0
    %s1948 = scalar_lea.vmem %s4, 2
    %v1949 = vld [vmem:[%s1948] ss:$4 sm:$0xf]
    %s1950 = scalar_lea.vmem %s5, 2
    %v1951 = vld [vmem:[%s1950] ss:$4 sm:$0xf]
    %v1952 = vsel %vm162, %v1706, 0.0
    %v1953 = vrot.slane %v1952, 4
    %v1954 = vadd.f32 %v1952, %v1953
    %v1955 = vrot.slane %v1954, 2
    %v1956 = vadd.f32 %v1954, %v1955
    %v1957 = vrot.slane %v1956, 1
    %v1958 = vadd.f32 %v1956, %v1957
    %v1959 = vsel %vm162, %v1786, 0.0
    %v1960 = vrot.slane %v1959, 4
    %v1961 = vadd.f32 %v1959, %v1960
    %v1962 = vrot.slane %v1961, 2
    %v1963 = vadd.f32 %v1961, %v1962
    %v1964 = vrot.slane %v1963, 1
    %v1965 = vadd.f32 %v1963, %v1964
    %v1966 = vsel %vm162, %v1866, 0.0
    %v1967 = vrot.slane %v1966, 4
    %v1968 = vadd.f32 %v1966, %v1967
    %v1969 = vrot.slane %v1968, 2
    %v1970 = vadd.f32 %v1968, %v1969
    %v1971 = vrot.slane %v1970, 1
    %v1972 = vadd.f32 %v1970, %v1971
    %v1973 = vsel %vm162, %v1946, 0.0
    %v1974 = vrot.slane %v1973, 4
    %v1975 = vadd.f32 %v1973, %v1974
    %v1976 = vrot.slane %v1975, 2
    %v1977 = vadd.f32 %v1975, %v1976
    %v1978 = vrot.slane %v1977, 1
    %v1979 = vadd.f32 %v1977, %v1978
    %v1980 = vmul.f32 %v1958, %v197
    %v1981 = vmul.f32 %v1965, %v197
    %v1982 = vmul.f32 %v1972, %v197
    %v1983 = vmul.f32 %v1979, %v197
    %v1984 = vsub.f32 %v1706, %v1980
    %v1985 = vsub.f32 %v1786, %v1981
    %v1986 = vsub.f32 %v1866, %v1982
    %v1987 = vsub.f32 %v1946, %v1983
    %v1988 = vmul.f32 %v1984, %v1984
    %v1989 = vmul.f32 %v1985, %v1985
    %v1990 = vmul.f32 %v1986, %v1986
    %v1991 = vmul.f32 %v1987, %v1987
    %v1992 = vsel %vm162, %v1988, 0.0
    %v1993 = vrot.slane %v1992, 4
    %v1994 = vadd.f32 %v1992, %v1993
    %v1995 = vrot.slane %v1994, 2
    %v1996 = vadd.f32 %v1994, %v1995
    %v1997 = vrot.slane %v1996, 1
    %v1998 = vadd.f32 %v1996, %v1997
    %v1999 = vsel %vm162, %v1989, 0.0
    %v2000 = vrot.slane %v1999, 4
    %v2001 = vadd.f32 %v1999, %v2000
    %v2002 = vrot.slane %v2001, 2
    %v2003 = vadd.f32 %v2001, %v2002
    %v2004 = vrot.slane %v2003, 1
    %v2005 = vadd.f32 %v2003, %v2004
    %v2006 = vsel %vm162, %v1990, 0.0
    %v2007 = vrot.slane %v2006, 4
    %v2008 = vadd.f32 %v2006, %v2007
    %v2009 = vrot.slane %v2008, 2
    %v2010 = vadd.f32 %v2008, %v2009
    %v2011 = vrot.slane %v2010, 1
    %v2012 = vadd.f32 %v2010, %v2011
    %v2013 = vsel %vm162, %v1991, 0.0
    %v2014 = vrot.slane %v2013, 4
    %v2015 = vadd.f32 %v2013, %v2014
    %v2016 = vrot.slane %v2015, 2
    %v2017 = vadd.f32 %v2015, %v2016
    %v2018 = vrot.slane %v2017, 1
    %v2019 = vadd.f32 %v2017, %v2018
    %v2020 = vmul.f32 %v1998, %v197
    %v2021 = vmul.f32 %v2005, %v197
    %v2022 = vmul.f32 %v2012, %v197
    %v2023 = vmul.f32 %v2019, %v197
    %v2024 = vadd.f32 %v2020, 1e-05
    %v2025 = vadd.f32 %v2021, 1e-05
    %v2026 = vadd.f32 %v2022, 1e-05
    %v2027 = vadd.f32 %v2023, 1e-05
    %v2028 = vrsqrt.pop %v2024
    %v2029 = vmul.f32 %v2028, %v2024
    %v2030 = vmul.f32 %v2029, %v2028
    %v2031 = vmul.f32 0.5, %v2030
    %v2032 = vsub.f32 1.5, %v2031
    %v2033 = vmul.f32 %v2028, %v2032
    %vm2034 = vweird.f32 %v2024
    %vm2035 = vweird.f32 %v2028
    %vm2036 = vmor %vm2034, %vm2035
    %v2037 = vsel %vm2036, %v2028, %v2033
    %v2038 = vrsqrt.pop %v2025
    %v2039 = vmul.f32 %v2038, %v2025
    %v2040 = vmul.f32 %v2039, %v2038
    %v2041 = vmul.f32 0.5, %v2040
    %v2042 = vsub.f32 1.5, %v2041
    %v2043 = vmul.f32 %v2038, %v2042
    %vm2044 = vweird.f32 %v2025
    %vm2045 = vweird.f32 %v2038
    %vm2046 = vmor %vm2044, %vm2045
    %v2047 = vsel %vm2046, %v2038, %v2043
    %v2048 = vrsqrt.pop %v2026
    %v2049 = vmul.f32 %v2048, %v2026
    %v2050 = vmul.f32 %v2049, %v2048
    %v2051 = vmul.f32 0.5, %v2050
    %v2052 = vsub.f32 1.5, %v2051
    %v2053 = vmul.f32 %v2048, %v2052
    %vm2054 = vweird.f32 %v2026
    %vm2055 = vweird.f32 %v2048
    %vm2056 = vmor %vm2054, %vm2055
    %v2057 = vsel %vm2056, %v2048, %v2053
    %v2058 = vrsqrt.pop %v2027
    %v2059 = vmul.f32 %v2058, %v2027
    %v2060 = vmul.f32 %v2059, %v2058
    %v2061 = vmul.f32 0.5, %v2060
    %v2062 = vsub.f32 1.5, %v2061
    %v2063 = vmul.f32 %v2058, %v2062
    %vm2064 = vweird.f32 %v2027
    %vm2065 = vweird.f32 %v2058
    %vm2066 = vmor %vm2064, %vm2065
    %v2067 = vsel %vm2066, %v2058, %v2063
    %v2072 = vrot.slane %v2047, 7
    %v2073 = vrot.slane %v2057, 6
    %v2074 = vrot.slane %v2067, 5
    %v2075 = vsel %vm293, %v2037, %v2072
    %v2076 = vsel %vm295, %v2073, %v2074
    %v2077 = vsel %vm162, %v2075, %v2076
    %v2079 = vmul.f32 %v1949, %v2077
    %v2081 = vperm.slane %v2079, 0
    %v2082 = vperm.slane %v2079, 1
    %v2083 = vperm.slane %v2079, 2
    %v2084 = vperm.slane %v2079, 3
    %v2089 = vmul.f32 %v1980, %v2081
    %v2090 = vmul.f32 %v1981, %v2082
    %v2091 = vmul.f32 %v1982, %v2083
    %v2092 = vmul.f32 %v1983, %v2084
    %v2097 = vrot.slane %v2090, 7
    %v2098 = vrot.slane %v2091, 6
    %v2099 = vrot.slane %v2092, 5
    %v2100 = vsel %vm293, %v2089, %v2097
    %v2101 = vsel %vm295, %v2098, %v2099
    %v2102 = vsel %vm162, %v2100, %v2101
    %v2104 = vsub.f32 %v1951, %v2102
    %v2105 = vmul.f32 %v1706, %v2081
    %v2106 = vmul.f32 %v1786, %v2082
    %v2107 = vmul.f32 %v1866, %v2083
    %v2108 = vmul.f32 %v1946, %v2084
    %v2110 = vperm.slane %v2104, 0
    %v2111 = vperm.slane %v2104, 1
    %v2112 = vperm.slane %v2104, 2
    %v2113 = vperm.slane %v2104, 3
    %v2118 = vadd.f32 %v2105, %v2110
    %v2119 = vadd.f32 %v2106, %v2111
    %v2120 = vadd.f32 %v2107, %v2112
    %v2121 = vadd.f32 %v2108, %v2113
    %vm2122 = vcmp.gt.f32.partialorder %v2118, 0.0
    %vm2123 = vcmp.gt.f32.partialorder %v2119, 0.0
    %vm2124 = vcmp.gt.f32.partialorder %v2120, 0.0
    %vm2125 = vcmp.gt.f32.partialorder %v2121, 0.0
    %v2126 = vmul.f32 %v2118, 0.01
    %v2127 = vmul.f32 %v2119, 0.01
    %v2128 = vmul.f32 %v2120, 0.01
    %v2129 = vmul.f32 %v2121, 0.01
    %v2130 = vsel %vm2122, %v2118, %v2126
    %v2131 = vsel %vm2123, %v2119, %v2127
    %v2132 = vsel %vm2124, %v2120, %v2128
    %v2133 = vsel %vm2125, %v2121, %v2129
    %v2134 = vld [vmem:[%s6] sm:$0xff]
    %v2135 = vld [vmem:[%s6 + $0x8] sm:$0xff]
    %v2136 = vld [vmem:[%s6 + $0x10] sm:$0xff]
    %v2137 = vld [vmem:[%s6 + $0x18] sm:$0xff]
    %v2138 = vld [vmem:[%s6 + $0x20] sm:$0xff]
    %v2139 = vld [vmem:[%s6 + $0x28] sm:$0xff]
    %v2140 = vld [vmem:[%s6 + $0x30] sm:$0xff]
    %v2141 = vld [vmem:[%s6 + $0x38] sm:$0xff]
    %v2142 = vld [vmem:[%s6 + $0x40] sm:$0xff]
    %v2143 = vld [vmem:[%s6 + $0x48] sm:$0xff]
    %v2144 = vld [vmem:[%s6 + $0x50] sm:$0xff]
    %v2145 = vld [vmem:[%s6 + $0x58] sm:$0xff]
    %v2146 = vld [vmem:[%s6 + $0x60] sm:$0xff]
    %v2147 = vld [vmem:[%s6 + $0x68] sm:$0xff]
    %v2148 = vld [vmem:[%s6 + $0x70] sm:$0xff]
    %v2149 = vld [vmem:[%s6 + $0x78] sm:$0xff]
    %v2150 = vld [vmem:[%s6 + $0x80] sm:$0xff]
    %v2151 = vld [vmem:[%s6 + $0x88] sm:$0xff]
    %v2152 = vld [vmem:[%s6 + $0x90] sm:$0xff]
    %v2153 = vld [vmem:[%s6 + $0x98] sm:$0xff]
    %v2154 = vld [vmem:[%s6 + $0xa0] sm:$0xff]
    %v2155 = vld [vmem:[%s6 + $0xa8] sm:$0xff]
    %v2156 = vld [vmem:[%s6 + $0xb0] sm:$0xff]
    %v2157 = vld [vmem:[%s6 + $0xb8] sm:$0xff]
    %v2158 = vld [vmem:[%s6 + $0xc0] sm:$0xff]
    %v2159 = vld [vmem:[%s6 + $0xc8] sm:$0xff]
    %v2160 = vld [vmem:[%s6 + $0xd0] sm:$0xff]
    %v2161 = vld [vmem:[%s6 + $0xd8] sm:$0xff]
    %v2162 = vld [vmem:[%s6 + $0xe0] sm:$0xff]
    %v2163 = vld [vmem:[%s6 + $0xe8] sm:$0xff]
    %v2164 = vld [vmem:[%s6 + $0xf0] sm:$0xff]
    %v2165 = vld [vmem:[%s6 + $0xf8] sm:$0xff]
    %v2166 = vld [vmem:[%s6 + $0x100] sm:$0xff]
    %v2167 = vld [vmem:[%s6 + $0x108] sm:$0xff]
    %v2168 = vld [vmem:[%s6 + $0x110] sm:$0xff]
    %v2169 = vld [vmem:[%s6 + $0x118] sm:$0xff]
    %v2170 = vld [vmem:[%s6 + $0x120] sm:$0xff]
    %v2171 = vld [vmem:[%s6 + $0x128] sm:$0xff]
    %v2172 = vld [vmem:[%s6 + $0x130] sm:$0xff]
    %v2173 = vld [vmem:[%s6 + $0x138] sm:$0xff]
    %v2174 = vld [vmem:[%s6 + $0x140] sm:$0xff]
    %v2175 = vld [vmem:[%s6 + $0x148] sm:$0xff]
    %v2176 = vld [vmem:[%s6 + $0x150] sm:$0xff]
    %v2177 = vld [vmem:[%s6 + $0x158] sm:$0xff]
    %v2178 = vld [vmem:[%s6 + $0x160] sm:$0xff]
    %v2179 = vld [vmem:[%s6 + $0x168] sm:$0xff]
    %v2180 = vld [vmem:[%s6 + $0x170] sm:$0xff]
    %v2181 = vld [vmem:[%s6 + $0x178] sm:$0xff]
    %v2182 = vld [vmem:[%s6 + $0x180] sm:$0xff]
    %v2183 = vld [vmem:[%s6 + $0x188] sm:$0xff]
    %v2184 = vld [vmem:[%s6 + $0x190] sm:$0xff]
    %v2185 = vld [vmem:[%s6 + $0x198] sm:$0xff]
    %v2186 = vld [vmem:[%s6 + $0x1a0] sm:$0xff]
    %v2187 = vld [vmem:[%s6 + $0x1a8] sm:$0xff]
    %v2188 = vld [vmem:[%s6 + $0x1b0] sm:$0xff]
    %v2189 = vld [vmem:[%s6 + $0x1b8] sm:$0xff]
    %v2190 = vld [vmem:[%s6 + $0x1c0] sm:$0xff]
    %v2191 = vld [vmem:[%s6 + $0x1c8] sm:$0xff]
    %v2192 = vld [vmem:[%s6 + $0x1d0] sm:$0xff]
    %v2193 = vld [vmem:[%s6 + $0x1d8] sm:$0xff]
    %v2194 = vld [vmem:[%s6 + $0x1e0] sm:$0xff]
    %v2195 = vld [vmem:[%s6 + $0x1e8] sm:$0xff]
    %v2196 = vld [vmem:[%s6 + $0x1f0] sm:$0xff]
    %v2197 = vld [vmem:[%s6 + $0x1f8] sm:$0xff]
    %v2198 = vld [vmem:[#allocation2] sm:$0x1]
    %v2200 = vperm.slane %v2198, 0
    %2202 = vmatpush.msra.mxu0 %v2149
    %2203 = vmatpush.msra.mxu0 %v2148
    %2204 = vmatpush.msra.mxu0 %v2147
    %2205 = vmatpush.msra.mxu0 %v2146
    %2206 = vmatpush.msra.mxu0 %v2145
    %2207 = vmatpush.msra.mxu0 %v2144
    %2208 = vmatpush.msra.mxu0 %v2143
    %2209 = vmatpush.msra.mxu0 %v2142
    %2210 = vmatpush.msra.mxu0 %v2141
    %2211 = vmatpush.msra.mxu0 %v2140
    %2212 = vmatpush.msra.mxu0 %v2139
    %2213 = vmatpush.msra.mxu0 %v2138
    %2214 = vmatpush.msra.mxu0 %v2137
    %2215 = vmatpush.msra.mxu0 %v2136
    %2216 = vmatpush.msra.mxu0 %v2135
    %2217 = vmatpush.msra.mxu0 %v2134
    %2218 = vmatmul.f32.gmra.mxu0 %v2130
    %v2219 = vpop.f32.mrf.mxu0
    %v2220 = vadd.f32 %v2200, %v2219
    %2221 = vdwg.mxu0
    %2222 = vmatpush.msra.mxu0 %v2165
    %2223 = vmatpush.msra.mxu0 %v2164
    %2224 = vmatpush.msra.mxu0 %v2163
    %2225 = vmatpush.msra.mxu0 %v2162
    %2226 = vmatpush.msra.mxu0 %v2161
    %2227 = vmatpush.msra.mxu0 %v2160
    %2228 = vmatpush.msra.mxu0 %v2159
    %2229 = vmatpush.msra.mxu0 %v2158
    %2230 = vmatpush.msra.mxu0 %v2157
    %2231 = vmatpush.msra.mxu0 %v2156
    %2232 = vmatpush.msra.mxu0 %v2155
    %2233 = vmatpush.msra.mxu0 %v2154
    %2234 = vmatpush.msra.mxu0 %v2153
    %2235 = vmatpush.msra.mxu0 %v2152
    %2236 = vmatpush.msra.mxu0 %v2151
    %2237 = vmatpush.msra.mxu0 %v2150
    %2238 = vmatmul.f32.gmra.mxu0 %v2131
    %v2239 = vpop.f32.mrf.mxu0
    %v2240 = vadd.f32 %v2220, %v2239
    %2241 = vdwg.mxu0
    %2242 = vmatpush.msra.mxu0 %v2181
    %2243 = vmatpush.msra.mxu0 %v2180
    %2244 = vmatpush.msra.mxu0 %v2179
    %2245 = vmatpush.msra.mxu0 %v2178
    %2246 = vmatpush.msra.mxu0 %v2177
    %2247 = vmatpush.msra.mxu0 %v2176
    %2248 = vmatpush.msra.mxu0 %v2175
    %2249 = vmatpush.msra.mxu0 %v2174
    %2250 = vmatpush.msra.mxu0 %v2173
    %2251 = vmatpush.msra.mxu0 %v2172
    %2252 = vmatpush.msra.mxu0 %v2171
    %2253 = vmatpush.msra.mxu0 %v2170
    %2254 = vmatpush.msra.mxu0 %v2169
    %2255 = vmatpush.msra.mxu0 %v2168
    %2256 = vmatpush.msra.mxu0 %v2167
    %2257 = vmatpush.msra.mxu0 %v2166
    %2258 = vmatmul.f32.gmra.mxu0 %v2132
    %v2259 = vpop.f32.mrf.mxu0
    %v2260 = vadd.f32 %v2240, %v2259
    %2261 = vdwg.mxu0
    %2262 = vmatpush.msra.mxu0 %v2197
    %2263 = vmatpush.msra.mxu0 %v2196
    %2264 = vmatpush.msra.mxu0 %v2195
    %2265 = vmatpush.msra.mxu0 %v2194
    %2266 = vmatpush.msra.mxu0 %v2193
    %2267 = vmatpush.msra.mxu0 %v2192
    %2268 = vmatpush.msra.mxu0 %v2191
    %2269 = vmatpush.msra.mxu0 %v2190
    %2270 = vmatpush.msra.mxu0 %v2189
    %2271 = vmatpush.msra.mxu0 %v2188
    %2272 = vmatpush.msra.mxu0 %v2187
    %2273 = vmatpush.msra.mxu0 %v2186
    %2274 = vmatpush.msra.mxu0 %v2185
    %2275 = vmatpush.msra.mxu0 %v2184
    %2276 = vmatpush.msra.mxu0 %v2183
    %2277 = vmatpush.msra.mxu0 %v2182
    %2278 = vmatmul.f32.gmra.mxu0 %v2133
    %v2279 = vpop.f32.mrf.mxu0
    %v2280 = vadd.f32 %v2260, %v2279
    %2281 = vdwg.mxu0
    %v2282 = vsub.f32 0.0, %v2280
    %v2283 = vmul.f32 %v2282, 1.442695
    %v2284 = vpow.pop %v2283
    %v2285 = vadd.f32 %v2284, 1.0
    %v2286 = vrcp.pop %v2285
    %v2287 = vmul.f32 %v2285, %v2286
    %v2288 = vsub.f32 1.0, %v2287
    %v2289 = vmul.f32 %v2286, %v2288
    %v2290 = vadd.f32 %v2286, %v2289
    %vm2291 = vweird.f32 %v2285
    %vm2292 = vweird.f32 %v2286
    %vm2293 = vmor %vm2291, %vm2292
    %v2294 = vsel %vm2293, %v2286, %v2290
    %v2295 = vand.u32 2147483647, %v2285
    %vm2296 = vcmp.eq.f32.partialorder %v2295, 8.507059e+37
    %v2297 = vand.u32 %v2285, 2147483648
    %v2298 = vor.u32 1.1754944e-38, %v2297
    %v2299 = vsel %vm2296, %v2298, %v2294
    %v2300 = vmul.f32 1.0, %v2299
    %vm2301 = vcmask 1024
    %2302 = vst.msk [vmem:[%s8] sm:$0x3] %vm2301, %v2300
    // Predicated region
    $region42: #{tpu_custom_call.1} parent=1 // pred_check
      _
    $region43: #{tpu_custom_call.1} parent=1 // pred_check_branch
      %2304 = sbr.rel (0) target = $region45
    $region44: #{tpu_custom_call.1} parent=1 // pred_region
      _
    $region45: #{tpu_custom_call.1} parent=1 // pred_fallthru
      _
    // Predicated region
    $region46: #{tpu_custom_call.1} parent=1 // pred_check
      _
    $region47: #{tpu_custom_call.1} parent=1 // pred_check_branch
      %2306 = sbr.rel (0) target = $region49
    $region48: #{tpu_custom_call.1} parent=1 // pred_region
      _
    $region49: #{tpu_custom_call.1} parent=1 // pred_fallthru
      _
    %2307 = vsyncpa [#allocation4], 1
    %2308 = vsyncpa [#allocation6], 1

</llo_original>
